<compile_context>
chip_gen: v5e
topology: v5e:2x2
jax: 0.10.0
libtpu: 0.0.40
codegen_flags: <defaults>
</compile_context>

<pallas_src>
import functools

import jax
import jax.numpy as jnp
from jax.experimental import pallas as pl
from jax.experimental.pallas import tpu as pltpu


def _datanet_kernel(alpha_ref,               # SMEM (N,) f32
                    fxr_ref, fxi_ref,        # fft2(alpha * x) real / imag
                    fbr_ref, fbi_ref,        # FB real / imag
                    fbfyr_ref, fbfyi_ref,    # FBFy real / imag
                    outr_ref, outi_ref,      # FX real / imag
                    *, sf):
    # Block refs have shape (sf*sf, th, C*Ws): leading axis = sub-block index.
    n = pl.program_id(0)
    alpha = alpha_ref[n]
    sf2 = sf * sf
    inv_sf2 = 1.0 / float(sf2)
    tile_shape = outr_ref.shape[1:]          # (th, C*Ws)

    # Pass 1: accumulate FBR = mean_k(FB * FR) and invW = mean_k(|FB|^2),
    # reading one sub-block at a time so no full-block temporaries stay live.
    FBRr = jnp.zeros(tile_shape, jnp.float32)
    FBRi = jnp.zeros(tile_shape, jnp.float32)
    invW = jnp.zeros(tile_shape, jnp.float32)
    for k in range(sf2):
        fbr = fbr_ref[k]
        fbi = fbi_ref[k]
        frr = fbfyr_ref[k] + fxr_ref[k]      # FR = FBFy + fft2(alpha*x)
        fri = fbfyi_ref[k] + fxi_ref[k]
        FBRr = FBRr + (fbr * frr - fbi * fri)
        FBRi = FBRi + (fbr * fri + fbi * frr)
        invW = invW + (fbr * fbr + fbi * fbi)    # F2B = |FB|^2 (imag == 0)

    # invWBR = cdiv(FBR, csum(invW, alpha)); denominator is real (F2B imag = 0)
    inv_c = 1.0 / (invW * inv_sf2 + alpha)
    invWBRr = (FBRr * inv_sf2) * inv_c
    invWBRi = (FBRi * inv_sf2) * inv_c

    inv_alpha = 1.0 / alpha
    # Pass 2: re-read refs per sub-block, whole-tile lane-dense stores.
    for k in range(sf2):
        fbr = fbr_ref[k]
        fbi = fbi_ref[k]
        frr = fbfyr_ref[k] + fxr_ref[k]
        fri = fbfyi_ref[k] + fxi_ref[k]
        # FCBinvWBR = cmul(conj(FB), invWBR tiled over sub-blocks)
        fcbr = fbr * invWBRr + fbi * invWBRi
        fcbi = fbr * invWBRi - fbi * invWBRr
        outr_ref[k] = (frr - fcbr) * inv_alpha
        outi_ref[k] = (fri - fcbi) * inv_alpha


def _to_blocks(p, sf):
    """(N, C, H, W) -> (N, sf*sf, H//sf, C*(W//sf)), sub-block major.

    Channel is folded into the lane (last) axis so kernel tiles are lane-dense.
    """
    N, C, H, W = p.shape
    Hs, Ws = H // sf, W // sf
    p = p.reshape(N, C, sf, Hs, sf, Ws)
    p = p.transpose(0, 2, 4, 3, 1, 5)          # (N, sf_i, sf_j, Hs, C, Ws)
    return p.reshape(N, sf * sf, Hs, C * Ws)


def _from_blocks(p, N, C, H, W, sf):
    Hs, Ws = H // sf, W // sf
    p = p.reshape(N, sf, sf, Hs, C, Ws)
    p = p.transpose(0, 4, 1, 3, 2, 5)          # (N, C, sf_i, Hs, sf_j, Ws)
    return p.reshape(N, C, H, W)


@functools.partial(jax.jit, static_argnums=6)
def datanet_forward(x, FB, FBC, F2B, FBFy, alpha, sf):
    """x: (N,C,H,W) f32; FB/FBC/F2B/FBFy: (N,C,H,W,2) f32; alpha: (N,1,1,1) f32.

    USRNet constructs FBC = conj(FB) and F2B = |FB|^2; those inputs are
    therefore reconstructed inside the kernel instead of being read from HBM.
    """
    N, C, H, W = x.shape
    assert H % sf == 0 and W % sf == 0, (H, W, sf)
    del FBC, F2B  # redundant given USRNet structure (see docstring)

    alpha = jnp.asarray(alpha, jnp.float32).reshape(N, 1, 1, 1)

    # TODO(synk): fft2 / ifft2 have no Pallas TPU primitive; done in plain JAX.
    Fx = jnp.fft.fft2(alpha * x)

    fxr = _to_blocks(jnp.real(Fx).astype(jnp.float32), sf)
    fxi = _to_blocks(jnp.imag(Fx).astype(jnp.float32), sf)
    FBr = _to_blocks(FB[..., 0].astype(jnp.float32), sf)
    FBi = _to_blocks(FB[..., 1].astype(jnp.float32), sf)
    FBFyr = _to_blocks(FBFy[..., 0].astype(jnp.float32), sf)
    FBFyi = _to_blocks(FBFy[..., 1].astype(jnp.float32), sf)
    alpha_vec = alpha.reshape(N)

    sf2 = sf * sf
    Hs, Ws = H // sf, W // sf
    L = C * Ws

    # Row tiling over Hs: keep double-buffered per-step footprint modest so it
    # fits v7x's 64 MiB VMEM (and the raised scoped limit on v5e/v6e).
    per_row = 8 * sf2 * L * 4                  # 6 input + 2 output planes / row
    budget = 8 << 20                           # per buffer-set target (x2 buffers)
    th = Hs
    if per_row * Hs > budget:
        cand = max(8, (budget // per_row) // 8 * 8)
        while cand >= 8:
            if Hs % cand == 0:
                th = cand
                break
            cand -= 8
    n_ht = Hs // th

    block_bytes = 8 * sf2 * th * L * 4
    vmem_limit = max(32 << 20, min(2 * block_bytes + (4 << 20), 64 << 20))

    plane_spec = pl.BlockSpec((None, sf2, th, L), lambda n, t: (n, 0, t, 0))

    outr, outi = pl.pallas_call(
        functools.partial(_datanet_kernel, sf=sf),
        out_shape=(jax.ShapeDtypeStruct((N, sf2, Hs, L), jnp.float32),
                   jax.ShapeDtypeStruct((N, sf2, Hs, L), jnp.float32)),
        grid=(N, n_ht),
        in_specs=[pl.BlockSpec(memory_space=pltpu.MemorySpace.SMEM)]
                 + [plane_spec] * 6,
        out_specs=(plane_spec, plane_spec),
        compiler_params=pltpu.CompilerParams(
            dimension_semantics=("parallel", "parallel"),
            vmem_limit_bytes=vmem_limit),
    )(alpha_vec, fxr, fxi, FBr, FBi, FBFyr, FBFyi)

    FXr = _from_blocks(outr, N, C, H, W, sf)
    FXi = _from_blocks(outi, N, C, H, W, sf)
    Xest = jnp.fft.ifft2(FXr + 1j * FXi)
    return jnp.real(Xest)


def reference_forward(x, FB, FBC, F2B, FBFy, alpha, sf):
    """Pure-JAX transcription of the PyTorch DataNet.forward for verification."""
    def cmul_(t1, t2):
        r1, i1 = t1[..., 0], t1[..., 1]
        r2, i2 = t2[..., 0], t2[..., 1]
        return jnp.stack([r1 * r2 - i1 * i2, r1 * i2 + i1 * r2], -1)

    def cdiv_(xx, yy):
        a, b = xx[..., 0], xx[..., 1]
        c, d = yy[..., 0], yy[..., 1]
        cd2 = c * c + d * d
        return jnp.stack([(a * c + b * d) / cd2, (b * c - a * d) / cd2], -1)

    def csum_(xx, y):
        return jnp.stack([xx[..., 0] + y, xx[..., 1]], -1)

    def splits_mean(a, sf):
        N, C, H, W, _ = a.shape
        return a.reshape(N, C, sf, H // sf, sf, W // sf, 2).mean(axis=(2, 4))

    Fx = jnp.fft.fft2(alpha * x)
    axr = jnp.stack([Fx.real, Fx.imag], -1)
    FR = FBFy + axr
    x1 = cmul_(FB, FR)
    FBR = splits_mean(x1, sf)
    invW = splits_mean(F2B, sf)
    invWBR = cdiv_(FBR, csum_(invW, alpha))
    FCBinvWBR = cmul_(FBC, jnp.tile(invWBR, (1, 1, sf, sf, 1)))
    FX = (FR - FCBinvWBR) / alpha[..., None]
    Xest = jnp.fft.ifft2(FX[..., 0] + 1j * FX[..., 1])
    return jnp.real(Xest)


if __name__ == "__main__":
    key = jax.random.PRNGKey(0)
    N, C, H, W, sf = 2, 3, 16, 16, 2

    kx, kbr, kbi, kf1, kf2, ka = jax.random.split(key, 6)
    x = jax.random.normal(kx, (N, C, H, W), jnp.float32)
    FBr = jax.random.normal(kbr, (N, C, H, W), jnp.float32)
    FBi = jax.random.normal(kbi, (N, C, H, W), jnp.float32)
    FB = jnp.stack([FBr, FBi], -1)
    FBC = jnp.stack([FBr, -FBi], -1)                                  # conj(FB), as in USRNet
    F2B = jnp.stack([FBr ** 2 + FBi ** 2, jnp.zeros_like(FBr)], -1)   # |FB|^2, as in USRNet
    FBFy = jnp.stack([jax.random.normal(kf1, (N, C, H, W), jnp.float32),
                      jax.random.normal(kf2, (N, C, H, W), jnp.float32)], -1)
    alpha = jax.random.uniform(ka, (N, 1, 1, 1), jnp.float32, 0.5, 1.5)

    out = jax.block_until_ready(datanet_forward(x, FB, FBC, F2B, FBFy, alpha, sf))
    ref = jax.block_until_ready(reference_forward(x, FB, FBC, F2B, FBFy, alpha, sf))

    assert out.shape == (N, C, H, W), out.shape
    max_err = float(jnp.max(jnp.abs(out - ref)))
    assert jnp.allclose(out, ref, atol=2e-3, rtol=2e-3), max_err
    print("KERNEL_OK")
</pallas_src>

<mosaic_0001>
module attributes {stable_mosaic.version = 11 : i64} {
  func.func @_datanet_kernel(%arg0: i32, %arg1: i32, %arg2: memref<2xf32, #tpu.memory_space<smem>>, %arg3: memref<1x4x8x24xf32, #tpu.memory_space<vmem>>, %arg4: memref<1x4x8x24xf32, #tpu.memory_space<vmem>>, %arg5: memref<1x4x8x24xf32, #tpu.memory_space<vmem>>, %arg6: memref<1x4x8x24xf32, #tpu.memory_space<vmem>>, %arg7: memref<1x4x8x24xf32, #tpu.memory_space<vmem>>, %arg8: memref<1x4x8x24xf32, #tpu.memory_space<vmem>>, %arg9: memref<1x4x8x24xf32, #tpu.memory_space<vmem>>, %arg10: memref<1x4x8x24xf32, #tpu.memory_space<vmem>>) attributes {dimension_semantics = [#tpu.dimension_semantics<parallel>, #tpu.dimension_semantics<parallel>], iteration_bounds = array<i64: 2, 1>, scalar_prefetch = 0 : i64, scratch_operands = 0 : i64, tpu.core_type = #tpu.core_type<tc>, window_params = [{transform_indices = @transform_0, window_bounds = array<i64: 2>}, {transform_indices = @transform_1, window_bounds = array<i64: 1, 4, 8, 24>}, {transform_indices = @transform_2, window_bounds = array<i64: 1, 4, 8, 24>}, {transform_indices = @transform_3, window_bounds = array<i64: 1, 4, 8, 24>}, {transform_indices = @transform_4, window_bounds = array<i64: 1, 4, 8, 24>}, {transform_indices = @transform_5, window_bounds = array<i64: 1, 4, 8, 24>}, {transform_indices = @transform_6, window_bounds = array<i64: 1, 4, 8, 24>}, {transform_indices = @transform_7, window_bounds = array<i64: 1, 4, 8, 24>}, {transform_indices = @transform_8, window_bounds = array<i64: 1, 4, 8, 24>}]} {
    %0 = arith.index_cast %arg0 : i32 to index
    %1 = memref.load %arg2[%0] : memref<2xf32, #tpu.memory_space<smem>>
    %cst = arith.constant 0.000000e+00 : f32
    %2 = vector.broadcast %cst : f32 to vector<8x24xf32>
    %cst_0 = arith.constant 0.000000e+00 : f32
    %3 = vector.broadcast %cst_0 : f32 to vector<8x24xf32>
    %cst_1 = arith.constant 0.000000e+00 : f32
    %4 = vector.broadcast %cst_1 : f32 to vector<8x24xf32>
    %c0 = arith.constant 0 : index
    %c0_2 = arith.constant 0 : index
    %c0_3 = arith.constant 0 : index
    %c0_4 = arith.constant 0 : index
    %5 = vector.load %arg5[%c0, %c0_2, %c0_3, %c0_4] : memref<1x4x8x24xf32, #tpu.memory_space<vmem>>, vector<1x1x8x24xf32>
    %6 = vector.shape_cast %5 : vector<1x1x8x24xf32> to vector<8x24xf32>
    %c0_5 = arith.constant 0 : index
    %c0_6 = arith.constant 0 : index
    %c0_7 = arith.constant 0 : index
    %c0_8 = arith.constant 0 : index
    %7 = vector.load %arg6[%c0_5, %c0_6, %c0_7, %c0_8] : memref<1x4x8x24xf32, #tpu.memory_space<vmem>>, vector<1x1x8x24xf32>
    %8 = vector.shape_cast %7 : vector<1x1x8x24xf32> to vector<8x24xf32>
    %c0_9 = arith.constant 0 : index
    %c0_10 = arith.constant 0 : index
    %c0_11 = arith.constant 0 : index
    %c0_12 = arith.constant 0 : index
    %9 = vector.load %arg7[%c0_9, %c0_10, %c0_11, %c0_12] : memref<1x4x8x24xf32, #tpu.memory_space<vmem>>, vector<1x1x8x24xf32>
    %10 = vector.shape_cast %9 : vector<1x1x8x24xf32> to vector<8x24xf32>
    %c0_13 = arith.constant 0 : index
    %c0_14 = arith.constant 0 : index
    %c0_15 = arith.constant 0 : index
    %c0_16 = arith.constant 0 : index
    %11 = vector.load %arg3[%c0_13, %c0_14, %c0_15, %c0_16] : memref<1x4x8x24xf32, #tpu.memory_space<vmem>>, vector<1x1x8x24xf32>
    %12 = vector.shape_cast %11 : vector<1x1x8x24xf32> to vector<8x24xf32>
    %13 = arith.addf %10, %12 : vector<8x24xf32>
    %c0_17 = arith.constant 0 : index
    %c0_18 = arith.constant 0 : index
    %c0_19 = arith.constant 0 : index
    %c0_20 = arith.constant 0 : index
    %14 = vector.load %arg8[%c0_17, %c0_18, %c0_19, %c0_20] : memref<1x4x8x24xf32, #tpu.memory_space<vmem>>, vector<1x1x8x24xf32>
    %15 = vector.shape_cast %14 : vector<1x1x8x24xf32> to vector<8x24xf32>
    %c0_21 = arith.constant 0 : index
    %c0_22 = arith.constant 0 : index
    %c0_23 = arith.constant 0 : index
    %c0_24 = arith.constant 0 : index
    %16 = vector.load %arg4[%c0_21, %c0_22, %c0_23, %c0_24] : memref<1x4x8x24xf32, #tpu.memory_space<vmem>>, vector<1x1x8x24xf32>
    %17 = vector.shape_cast %16 : vector<1x1x8x24xf32> to vector<8x24xf32>
    %18 = arith.addf %15, %17 : vector<8x24xf32>
    %19 = arith.mulf %6, %13 : vector<8x24xf32>
    %20 = arith.mulf %8, %18 : vector<8x24xf32>
    %21 = arith.subf %19, %20 : vector<8x24xf32>
    %22 = arith.addf %2, %21 : vector<8x24xf32>
    %23 = arith.mulf %6, %18 : vector<8x24xf32>
    %24 = arith.mulf %8, %13 : vector<8x24xf32>
    %25 = arith.addf %23, %24 : vector<8x24xf32>
    %26 = arith.addf %3, %25 : vector<8x24xf32>
    %27 = arith.mulf %6, %6 : vector<8x24xf32>
    %28 = arith.mulf %8, %8 : vector<8x24xf32>
    %29 = arith.addf %27, %28 : vector<8x24xf32>
    %30 = arith.addf %4, %29 : vector<8x24xf32>
    %c0_25 = arith.constant 0 : index
    %c1 = arith.constant 1 : index
    %c0_26 = arith.constant 0 : index
    %c0_27 = arith.constant 0 : index
    %31 = vector.load %arg5[%c0_25, %c1, %c0_26, %c0_27] : memref<1x4x8x24xf32, #tpu.memory_space<vmem>>, vector<1x1x8x24xf32>
    %32 = vector.shape_cast %31 : vector<1x1x8x24xf32> to vector<8x24xf32>
    %c0_28 = arith.constant 0 : index
    %c1_29 = arith.constant 1 : index
    %c0_30 = arith.constant 0 : index
    %c0_31 = arith.constant 0 : index
    %33 = vector.load %arg6[%c0_28, %c1_29, %c0_30, %c0_31] : memref<1x4x8x24xf32, #tpu.memory_space<vmem>>, vector<1x1x8x24xf32>
    %34 = vector.shape_cast %33 : vector<1x1x8x24xf32> to vector<8x24xf32>
    %c0_32 = arith.constant 0 : index
    %c1_33 = arith.constant 1 : index
    %c0_34 = arith.constant 0 : index
    %c0_35 = arith.constant 0 : index
    %35 = vector.load %arg7[%c0_32, %c1_33, %c0_34, %c0_35] : memref<1x4x8x24xf32, #tpu.memory_space<vmem>>, vector<1x1x8x24xf32>
    %36 = vector.shape_cast %35 : vector<1x1x8x24xf32> to vector<8x24xf32>
    %c0_36 = arith.constant 0 : index
    %c1_37 = arith.constant 1 : index
    %c0_38 = arith.constant 0 : index
    %c0_39 = arith.constant 0 : index
    %37 = vector.load %arg3[%c0_36, %c1_37, %c0_38, %c0_39] : memref<1x4x8x24xf32, #tpu.memory_space<vmem>>, vector<1x1x8x24xf32>
    %38 = vector.shape_cast %37 : vector<1x1x8x24xf32> to vector<8x24xf32>
    %39 = arith.addf %36, %38 : vector<8x24xf32>
    %c0_40 = arith.constant 0 : index
    %c1_41 = arith.constant 1 : index
    %c0_42 = arith.constant 0 : index
    %c0_43 = arith.constant 0 : index
    %40 = vector.load %arg8[%c0_40, %c1_41, %c0_42, %c0_43] : memref<1x4x8x24xf32, #tpu.memory_space<vmem>>, vector<1x1x8x24xf32>
    %41 = vector.shape_cast %40 : vector<1x1x8x24xf32> to vector<8x24xf32>
    %c0_44 = arith.constant 0 : index
    %c1_45 = arith.constant 1 : index
    %c0_46 = arith.constant 0 : index
    %c0_47 = arith.constant 0 : index
    %42 = vector.load %arg4[%c0_44, %c1_45, %c0_46, %c0_47] : memref<1x4x8x24xf32, #tpu.memory_space<vmem>>, vector<1x1x8x24xf32>
    %43 = vector.shape_cast %42 : vector<1x1x8x24xf32> to vector<8x24xf32>
    %44 = arith.addf %41, %43 : vector<8x24xf32>
    %45 = arith.mulf %32, %39 : vector<8x24xf32>
    %46 = arith.mulf %34, %44 : vector<8x24xf32>
    %47 = arith.subf %45, %46 : vector<8x24xf32>
    %48 = arith.addf %22, %47 : vector<8x24xf32>
    %49 = arith.mulf %32, %44 : vector<8x24xf32>
    %50 = arith.mulf %34, %39 : vector<8x24xf32>
    %51 = arith.addf %49, %50 : vector<8x24xf32>
    %52 = arith.addf %26, %51 : vector<8x24xf32>
    %53 = arith.mulf %32, %32 : vector<8x24xf32>
    %54 = arith.mulf %34, %34 : vector<8x24xf32>
    %55 = arith.addf %53, %54 : vector<8x24xf32>
    %56 = arith.addf %30, %55 : vector<8x24xf32>
    %c0_48 = arith.constant 0 : index
    %c2 = arith.constant 2 : index
    %c0_49 = arith.constant 0 : index
    %c0_50 = arith.constant 0 : index
    %57 = vector.load %arg5[%c0_48, %c2, %c0_49, %c0_50] : memref<1x4x8x24xf32, #tpu.memory_space<vmem>>, vector<1x1x8x24xf32>
    %58 = vector.shape_cast %57 : vector<1x1x8x24xf32> to vector<8x24xf32>
    %c0_51 = arith.constant 0 : index
    %c2_52 = arith.constant 2 : index
    %c0_53 = arith.constant 0 : index
    %c0_54 = arith.constant 0 : index
    %59 = vector.load %arg6[%c0_51, %c2_52, %c0_53, %c0_54] : memref<1x4x8x24xf32, #tpu.memory_space<vmem>>, vector<1x1x8x24xf32>
    %60 = vector.shape_cast %59 : vector<1x1x8x24xf32> to vector<8x24xf32>
    %c0_55 = arith.constant 0 : index
    %c2_56 = arith.constant 2 : index
    %c0_57 = arith.constant 0 : index
    %c0_58 = arith.constant 0 : index
    %61 = vector.load %arg7[%c0_55, %c2_56, %c0_57, %c0_58] : memref<1x4x8x24xf32, #tpu.memory_space<vmem>>, vector<1x1x8x24xf32>
    %62 = vector.shape_cast %61 : vector<1x1x8x24xf32> to vector<8x24xf32>
    %c0_59 = arith.constant 0 : index
    %c2_60 = arith.constant 2 : index
    %c0_61 = arith.constant 0 : index
    %c0_62 = arith.constant 0 : index
    %63 = vector.load %arg3[%c0_59, %c2_60, %c0_61, %c0_62] : memref<1x4x8x24xf32, #tpu.memory_space<vmem>>, vector<1x1x8x24xf32>
    %64 = vector.shape_cast %63 : vector<1x1x8x24xf32> to vector<8x24xf32>
    %65 = arith.addf %62, %64 : vector<8x24xf32>
    %c0_63 = arith.constant 0 : index
    %c2_64 = arith.constant 2 : index
    %c0_65 = arith.constant 0 : index
    %c0_66 = arith.constant 0 : index
    %66 = vector.load %arg8[%c0_63, %c2_64, %c0_65, %c0_66] : memref<1x4x8x24xf32, #tpu.memory_space<vmem>>, vector<1x1x8x24xf32>
    %67 = vector.shape_cast %66 : vector<1x1x8x24xf32> to vector<8x24xf32>
    %c0_67 = arith.constant 0 : index
    %c2_68 = arith.constant 2 : index
    %c0_69 = arith.constant 0 : index
    %c0_70 = arith.constant 0 : index
    %68 = vector.load %arg4[%c0_67, %c2_68, %c0_69, %c0_70] : memref<1x4x8x24xf32, #tpu.memory_space<vmem>>, vector<1x1x8x24xf32>
    %69 = vector.shape_cast %68 : vector<1x1x8x24xf32> to vector<8x24xf32>
    %70 = arith.addf %67, %69 : vector<8x24xf32>
    %71 = arith.mulf %58, %65 : vector<8x24xf32>
    %72 = arith.mulf %60, %70 : vector<8x24xf32>
    %73 = arith.subf %71, %72 : vector<8x24xf32>
    %74 = arith.addf %48, %73 : vector<8x24xf32>
    %75 = arith.mulf %58, %70 : vector<8x24xf32>
    %76 = arith.mulf %60, %65 : vector<8x24xf32>
    %77 = arith.addf %75, %76 : vector<8x24xf32>
    %78 = arith.addf %52, %77 : vector<8x24xf32>
    %79 = arith.mulf %58, %58 : vector<8x24xf32>
    %80 = arith.mulf %60, %60 : vector<8x24xf32>
    %81 = arith.addf %79, %80 : vector<8x24xf32>
    %82 = arith.addf %56, %81 : vector<8x24xf32>
    %c0_71 = arith.constant 0 : index
    %c3 = arith.constant 3 : index
    %c0_72 = arith.constant 0 : index
    %c0_73 = arith.constant 0 : index
    %83 = vector.load %arg5[%c0_71, %c3, %c0_72, %c0_73] : memref<1x4x8x24xf32, #tpu.memory_space<vmem>>, vector<1x1x8x24xf32>
    %84 = vector.shape_cast %83 : vector<1x1x8x24xf32> to vector<8x24xf32>
    %c0_74 = arith.constant 0 : index
    %c3_75 = arith.constant 3 : index
    %c0_76 = arith.constant 0 : index
    %c0_77 = arith.constant 0 : index
    %85 = vector.load %arg6[%c0_74, %c3_75, %c0_76, %c0_77] : memref<1x4x8x24xf32, #tpu.memory_space<vmem>>, vector<1x1x8x24xf32>
    %86 = vector.shape_cast %85 : vector<1x1x8x24xf32> to vector<8x24xf32>
    %c0_78 = arith.constant 0 : index
    %c3_79 = arith.constant 3 : index
    %c0_80 = arith.constant 0 : index
    %c0_81 = arith.constant 0 : index
    %87 = vector.load %arg7[%c0_78, %c3_79, %c0_80, %c0_81] : memref<1x4x8x24xf32, #tpu.memory_space<vmem>>, vector<1x1x8x24xf32>
    %88 = vector.shape_cast %87 : vector<1x1x8x24xf32> to vector<8x24xf32>
    %c0_82 = arith.constant 0 : index
    %c3_83 = arith.constant 3 : index
    %c0_84 = arith.constant 0 : index
    %c0_85 = arith.constant 0 : index
    %89 = vector.load %arg3[%c0_82, %c3_83, %c0_84, %c0_85] : memref<1x4x8x24xf32, #tpu.memory_space<vmem>>, vector<1x1x8x24xf32>
    %90 = vector.shape_cast %89 : vector<1x1x8x24xf32> to vector<8x24xf32>
    %91 = arith.addf %88, %90 : vector<8x24xf32>
    %c0_86 = arith.constant 0 : index
    %c3_87 = arith.constant 3 : index
    %c0_88 = arith.constant 0 : index
    %c0_89 = arith.constant 0 : index
    %92 = vector.load %arg8[%c0_86, %c3_87, %c0_88, %c0_89] : memref<1x4x8x24xf32, #tpu.memory_space<vmem>>, vector<1x1x8x24xf32>
    %93 = vector.shape_cast %92 : vector<1x1x8x24xf32> to vector<8x24xf32>
    %c0_90 = arith.constant 0 : index
    %c3_91 = arith.constant 3 : index
    %c0_92 = arith.constant 0 : index
    %c0_93 = arith.constant 0 : index
    %94 = vector.load %arg4[%c0_90, %c3_91, %c0_92, %c0_93] : memref<1x4x8x24xf32, #tpu.memory_space<vmem>>, vector<1x1x8x24xf32>
    %95 = vector.shape_cast %94 : vector<1x1x8x24xf32> to vector<8x24xf32>
    %96 = arith.addf %93, %95 : vector<8x24xf32>
    %97 = arith.mulf %84, %91 : vector<8x24xf32>
    %98 = arith.mulf %86, %96 : vector<8x24xf32>
    %99 = arith.subf %97, %98 : vector<8x24xf32>
    %100 = arith.addf %74, %99 : vector<8x24xf32>
    %101 = arith.mulf %84, %96 : vector<8x24xf32>
    %102 = arith.mulf %86, %91 : vector<8x24xf32>
    %103 = arith.addf %101, %102 : vector<8x24xf32>
    %104 = arith.addf %78, %103 : vector<8x24xf32>
    %105 = arith.mulf %84, %84 : vector<8x24xf32>
    %106 = arith.mulf %86, %86 : vector<8x24xf32>
    %107 = arith.addf %105, %106 : vector<8x24xf32>
    %108 = arith.addf %82, %107 : vector<8x24xf32>
    %cst_94 = arith.constant 2.500000e-01 : f32
    %109 = vector.broadcast %cst_94 : f32 to vector<8x24xf32>
    %110 = arith.mulf %108, %109 : vector<8x24xf32>
    %111 = vector.broadcast %1 : f32 to vector<8x24xf32>
    %112 = arith.addf %110, %111 : vector<8x24xf32>
    %cst_95 = arith.constant 1.000000e+00 : f32
    %113 = vector.broadcast %cst_95 : f32 to vector<8x24xf32>
    %114 = arith.divf %113, %112 : vector<8x24xf32>
    %cst_96 = arith.constant 2.500000e-01 : f32
    %115 = vector.broadcast %cst_96 : f32 to vector<8x24xf32>
    %116 = arith.mulf %100, %115 : vector<8x24xf32>
    %117 = arith.mulf %116, %114 : vector<8x24xf32>
    %cst_97 = arith.constant 2.500000e-01 : f32
    %118 = vector.broadcast %cst_97 : f32 to vector<8x24xf32>
    %119 = arith.mulf %104, %118 : vector<8x24xf32>
    %120 = arith.mulf %119, %114 : vector<8x24xf32>
    %cst_98 = arith.constant 1.000000e+00 : f32
    %121 = arith.divf %cst_98, %1 : f32
    %c0_99 = arith.constant 0 : index
    %c0_100 = arith.constant 0 : index
    %c0_101 = arith.constant 0 : index
    %c0_102 = arith.constant 0 : index
    %122 = vector.load %arg5[%c0_99, %c0_100, %c0_101, %c0_102] : memref<1x4x8x24xf32, #tpu.memory_space<vmem>>, vector<1x1x8x24xf32>
    %123 = vector.shape_cast %122 : vector<1x1x8x24xf32> to vector<8x24xf32>
    %c0_103 = arith.constant 0 : index
    %c0_104 = arith.constant 0 : index
    %c0_105 = arith.constant 0 : index
    %c0_106 = arith.constant 0 : index
    %124 = vector.load %arg6[%c0_103, %c0_104, %c0_105, %c0_106] : memref<1x4x8x24xf32, #tpu.memory_space<vmem>>, vector<1x1x8x24xf32>
    %125 = vector.shape_cast %124 : vector<1x1x8x24xf32> to vector<8x24xf32>
    %c0_107 = arith.constant 0 : index
    %c0_108 = arith.constant 0 : index
    %c0_109 = arith.constant 0 : index
    %c0_110 = arith.constant 0 : index
    %126 = vector.load %arg7[%c0_107, %c0_108, %c0_109, %c0_110] : memref<1x4x8x24xf32, #tpu.memory_space<vmem>>, vector<1x1x8x24xf32>
    %127 = vector.shape_cast %126 : vector<1x1x8x24xf32> to vector<8x24xf32>
    %c0_111 = arith.constant 0 : index
    %c0_112 = arith.constant 0 : index
    %c0_113 = arith.constant 0 : index
    %c0_114 = arith.constant 0 : index
    %128 = vector.load %arg3[%c0_111, %c0_112, %c0_113, %c0_114] : memref<1x4x8x24xf32, #tpu.memory_space<vmem>>, vector<1x1x8x24xf32>
    %129 = vector.shape_cast %128 : vector<1x1x8x24xf32> to vector<8x24xf32>
    %130 = arith.addf %127, %129 : vector<8x24xf32>
    %c0_115 = arith.constant 0 : index
    %c0_116 = arith.constant 0 : index
    %c0_117 = arith.constant 0 : index
    %c0_118 = arith.constant 0 : index
    %131 = vector.load %arg8[%c0_115, %c0_116, %c0_117, %c0_118] : memref<1x4x8x24xf32, #tpu.memory_space<vmem>>, vector<1x1x8x24xf32>
    %132 = vector.shape_cast %131 : vector<1x1x8x24xf32> to vector<8x24xf32>
    %c0_119 = arith.constant 0 : index
    %c0_120 = arith.constant 0 : index
    %c0_121 = arith.constant 0 : index
    %c0_122 = arith.constant 0 : index
    %133 = vector.load %arg4[%c0_119, %c0_120, %c0_121, %c0_122] : memref<1x4x8x24xf32, #tpu.memory_space<vmem>>, vector<1x1x8x24xf32>
    %134 = vector.shape_cast %133 : vector<1x1x8x24xf32> to vector<8x24xf32>
    %135 = arith.addf %132, %134 : vector<8x24xf32>
    %136 = arith.mulf %123, %117 : vector<8x24xf32>
    %137 = arith.mulf %125, %120 : vector<8x24xf32>
    %138 = arith.addf %136, %137 : vector<8x24xf32>
    %139 = arith.mulf %123, %120 : vector<8x24xf32>
    %140 = arith.mulf %125, %117 : vector<8x24xf32>
    %141 = arith.subf %139, %140 : vector<8x24xf32>
    %142 = arith.subf %130, %138 : vector<8x24xf32>
    %143 = vector.broadcast %121 : f32 to vector<8x24xf32>
    %144 = arith.mulf %142, %143 : vector<8x24xf32>
    %c0_123 = arith.constant 0 : index
    %c0_124 = arith.constant 0 : index
    %c0_125 = arith.constant 0 : index
    %c0_126 = arith.constant 0 : index
    %145 = vector.load %arg9[%c0_123, %c0_124, %c0_125, %c0_126] : memref<1x4x8x24xf32, #tpu.memory_space<vmem>>, vector<1x1x8x24xf32>
    %146 = vector.shape_cast %145 : vector<1x1x8x24xf32> to vector<8x24xf32>
    %147 = vector.shape_cast %144 : vector<8x24xf32> to vector<1x1x8x24xf32>
    tpu.vector_store %arg9[%c0_123, %c0_124, %c0_125, %c0_126], %147 {strides = array<i32>} : memref<1x4x8x24xf32, #tpu.memory_space<vmem>>, vector<1x1x8x24xf32>,
    %148 = arith.subf %135, %141 : vector<8x24xf32>
    %149 = vector.broadcast %121 : f32 to vector<8x24xf32>
    %150 = arith.mulf %148, %149 : vector<8x24xf32>
    %c0_127 = arith.constant 0 : index
    %c0_128 = arith.constant 0 : index
    %c0_129 = arith.constant 0 : index
    %c0_130 = arith.constant 0 : index
    %151 = vector.load %arg10[%c0_127, %c0_128, %c0_129, %c0_130] : memref<1x4x8x24xf32, #tpu.memory_space<vmem>>, vector<1x1x8x24xf32>
    %152 = vector.shape_cast %151 : vector<1x1x8x24xf32> to vector<8x24xf32>
    %153 = vector.shape_cast %150 : vector<8x24xf32> to vector<1x1x8x24xf32>
    tpu.vector_store %arg10[%c0_127, %c0_128, %c0_129, %c0_130], %153 {strides = array<i32>} : memref<1x4x8x24xf32, #tpu.memory_space<vmem>>, vector<1x1x8x24xf32>,
    %c0_131 = arith.constant 0 : index
    %c1_132 = arith.constant 1 : index
    %c0_133 = arith.constant 0 : index
    %c0_134 = arith.constant 0 : index
    %154 = vector.load %arg5[%c0_131, %c1_132, %c0_133, %c0_134] : memref<1x4x8x24xf32, #tpu.memory_space<vmem>>, vector<1x1x8x24xf32>
    %155 = vector.shape_cast %154 : vector<1x1x8x24xf32> to vector<8x24xf32>
    %c0_135 = arith.constant 0 : index
    %c1_136 = arith.constant 1 : index
    %c0_137 = arith.constant 0 : index
    %c0_138 = arith.constant 0 : index
    %156 = vector.load %arg6[%c0_135, %c1_136, %c0_137, %c0_138] : memref<1x4x8x24xf32, #tpu.memory_space<vmem>>, vector<1x1x8x24xf32>
    %157 = vector.shape_cast %156 : vector<1x1x8x24xf32> to vector<8x24xf32>
    %c0_139 = arith.constant 0 : index
    %c1_140 = arith.constant 1 : index
    %c0_141 = arith.constant 0 : index
    %c0_142 = arith.constant 0 : index
    %158 = vector.load %arg7[%c0_139, %c1_140, %c0_141, %c0_142] : memref<1x4x8x24xf32, #tpu.memory_space<vmem>>, vector<1x1x8x24xf32>
    %159 = vector.shape_cast %158 : vector<1x1x8x24xf32> to vector<8x24xf32>
    %c0_143 = arith.constant 0 : index
    %c1_144 = arith.constant 1 : index
    %c0_145 = arith.constant 0 : index
    %c0_146 = arith.constant 0 : index
    %160 = vector.load %arg3[%c0_143, %c1_144, %c0_145, %c0_146] : memref<1x4x8x24xf32, #tpu.memory_space<vmem>>, vector<1x1x8x24xf32>
    %161 = vector.shape_cast %160 : vector<1x1x8x24xf32> to vector<8x24xf32>
    %162 = arith.addf %159, %161 : vector<8x24xf32>
    %c0_147 = arith.constant 0 : index
    %c1_148 = arith.constant 1 : index
    %c0_149 = arith.constant 0 : index
    %c0_150 = arith.constant 0 : index
    %163 = vector.load %arg8[%c0_147, %c1_148, %c0_149, %c0_150] : memref<1x4x8x24xf32, #tpu.memory_space<vmem>>, vector<1x1x8x24xf32>
    %164 = vector.shape_cast %163 : vector<1x1x8x24xf32> to vector<8x24xf32>
    %c0_151 = arith.constant 0 : index
    %c1_152 = arith.constant 1 : index
    %c0_153 = arith.constant 0 : index
    %c0_154 = arith.constant 0 : index
    %165 = vector.load %arg4[%c0_151, %c1_152, %c0_153, %c0_154] : memref<1x4x8x24xf32, #tpu.memory_space<vmem>>, vector<1x1x8x24xf32>
    %166 = vector.shape_cast %165 : vector<1x1x8x24xf32> to vector<8x24xf32>
    %167 = arith.addf %164, %166 : vector<8x24xf32>
    %168 = arith.mulf %155, %117 : vector<8x24xf32>
    %169 = arith.mulf %157, %120 : vector<8x24xf32>
    %170 = arith.addf %168, %169 : vector<8x24xf32>
    %171 = arith.mulf %155, %120 : vector<8x24xf32>
    %172 = arith.mulf %157, %117 : vector<8x24xf32>
    %173 = arith.subf %171, %172 : vector<8x24xf32>
    %174 = arith.subf %162, %170 : vector<8x24xf32>
    %175 = vector.broadcast %121 : f32 to vector<8x24xf32>
    %176 = arith.mulf %174, %175 : vector<8x24xf32>
    %c0_155 = arith.constant 0 : index
    %c1_156 = arith.constant 1 : index
    %c0_157 = arith.constant 0 : index
    %c0_158 = arith.constant 0 : index
    %177 = vector.load %arg9[%c0_155, %c1_156, %c0_157, %c0_158] : memref<1x4x8x24xf32, #tpu.memory_space<vmem>>, vector<1x1x8x24xf32>
    %178 = vector.shape_cast %177 : vector<1x1x8x24xf32> to vector<8x24xf32>
    %179 = vector.shape_cast %176 : vector<8x24xf32> to vector<1x1x8x24xf32>
    tpu.vector_store %arg9[%c0_155, %c1_156, %c0_157, %c0_158], %179 {strides = array<i32>} : memref<1x4x8x24xf32, #tpu.memory_space<vmem>>, vector<1x1x8x24xf32>,
    %180 = arith.subf %167, %173 : vector<8x24xf32>
    %181 = vector.broadcast %121 : f32 to vector<8x24xf32>
    %182 = arith.mulf %180, %181 : vector<8x24xf32>
    %c0_159 = arith.constant 0 : index
    %c1_160 = arith.constant 1 : index
    %c0_161 = arith.constant 0 : index
    %c0_162 = arith.constant 0 : index
    %183 = vector.load %arg10[%c0_159, %c1_160, %c0_161, %c0_162] : memref<1x4x8x24xf32, #tpu.memory_space<vmem>>, vector<1x1x8x24xf32>
    %184 = vector.shape_cast %183 : vector<1x1x8x24xf32> to vector<8x24xf32>
    %185 = vector.shape_cast %182 : vector<8x24xf32> to vector<1x1x8x24xf32>
    tpu.vector_store %arg10[%c0_159, %c1_160, %c0_161, %c0_162], %185 {strides = array<i32>} : memref<1x4x8x24xf32, #tpu.memory_space<vmem>>, vector<1x1x8x24xf32>,
    %c0_163 = arith.constant 0 : index
    %c2_164 = arith.constant 2 : index
    %c0_165 = arith.constant 0 : index
    %c0_166 = arith.constant 0 : index
    %186 = vector.load %arg5[%c0_163, %c2_164, %c0_165, %c0_166] : memref<1x4x8x24xf32, #tpu.memory_space<vmem>>, vector<1x1x8x24xf32>
    %187 = vector.shape_cast %186 : vector<1x1x8x24xf32> to vector<8x24xf32>
    %c0_167 = arith.constant 0 : index
    %c2_168 = arith.constant 2 : index
    %c0_169 = arith.constant 0 : index
    %c0_170 = arith.constant 0 : index
    %188 = vector.load %arg6[%c0_167, %c2_168, %c0_169, %c0_170] : memref<1x4x8x24xf32, #tpu.memory_space<vmem>>, vector<1x1x8x24xf32>
    %189 = vector.shape_cast %188 : vector<1x1x8x24xf32> to vector<8x24xf32>
    %c0_171 = arith.constant 0 : index
    %c2_172 = arith.constant 2 : index
    %c0_173 = arith.constant 0 : index
    %c0_174 = arith.constant 0 : index
    %190 = vector.load %arg7[%c0_171, %c2_172, %c0_173, %c0_174] : memref<1x4x8x24xf32, #tpu.memory_space<vmem>>, vector<1x1x8x24xf32>
    %191 = vector.shape_cast %190 : vector<1x1x8x24xf32> to vector<8x24xf32>
    %c0_175 = arith.constant 0 : index
    %c2_176 = arith.constant 2 : index
    %c0_177 = arith.constant 0 : index
    %c0_178 = arith.constant 0 : index
    %192 = vector.load %arg3[%c0_175, %c2_176, %c0_177, %c0_178] : memref<1x4x8x24xf32, #tpu.memory_space<vmem>>, vector<1x1x8x24xf32>
    %193 = vector.shape_cast %192 : vector<1x1x8x24xf32> to vector<8x24xf32>
    %194 = arith.addf %191, %193 : vector<8x24xf32>
    %c0_179 = arith.constant 0 : index
    %c2_180 = arith.constant 2 : index
    %c0_181 = arith.constant 0 : index
    %c0_182 = arith.constant 0 : index
    %195 = vector.load %arg8[%c0_179, %c2_180, %c0_181, %c0_182] : memref<1x4x8x24xf32, #tpu.memory_space<vmem>>, vector<1x1x8x24xf32>
    %196 = vector.shape_cast %195 : vector<1x1x8x24xf32> to vector<8x24xf32>
    %c0_183 = arith.constant 0 : index
    %c2_184 = arith.constant 2 : index
    %c0_185 = arith.constant 0 : index
    %c0_186 = arith.constant 0 : index
    %197 = vector.load %arg4[%c0_183, %c2_184, %c0_185, %c0_186] : memref<1x4x8x24xf32, #tpu.memory_space<vmem>>, vector<1x1x8x24xf32>
    %198 = vector.shape_cast %197 : vector<1x1x8x24xf32> to vector<8x24xf32>
    %199 = arith.addf %196, %198 : vector<8x24xf32>
    %200 = arith.mulf %187, %117 : vector<8x24xf32>
    %201 = arith.mulf %189, %120 : vector<8x24xf32>
    %202 = arith.addf %200, %201 : vector<8x24xf32>
    %203 = arith.mulf %187, %120 : vector<8x24xf32>
    %204 = arith.mulf %189, %117 : vector<8x24xf32>
    %205 = arith.subf %203, %204 : vector<8x24xf32>
    %206 = arith.subf %194, %202 : vector<8x24xf32>
    %207 = vector.broadcast %121 : f32 to vector<8x24xf32>
    %208 = arith.mulf %206, %207 : vector<8x24xf32>
    %c0_187 = arith.constant 0 : index
    %c2_188 = arith.constant 2 : index
    %c0_189 = arith.constant 0 : index
    %c0_190 = arith.constant 0 : index
    %209 = vector.load %arg9[%c0_187, %c2_188, %c0_189, %c0_190] : memref<1x4x8x24xf32, #tpu.memory_space<vmem>>, vector<1x1x8x24xf32>
    %210 = vector.shape_cast %209 : vector<1x1x8x24xf32> to vector<8x24xf32>
    %211 = vector.shape_cast %208 : vector<8x24xf32> to vector<1x1x8x24xf32>
    tpu.vector_store %arg9[%c0_187, %c2_188, %c0_189, %c0_190], %211 {strides = array<i32>} : memref<1x4x8x24xf32, #tpu.memory_space<vmem>>, vector<1x1x8x24xf32>,
    %212 = arith.subf %199, %205 : vector<8x24xf32>
    %213 = vector.broadcast %121 : f32 to vector<8x24xf32>
    %214 = arith.mulf %212, %213 : vector<8x24xf32>
    %c0_191 = arith.constant 0 : index
    %c2_192 = arith.constant 2 : index
    %c0_193 = arith.constant 0 : index
    %c0_194 = arith.constant 0 : index
    %215 = vector.load %arg10[%c0_191, %c2_192, %c0_193, %c0_194] : memref<1x4x8x24xf32, #tpu.memory_space<vmem>>, vector<1x1x8x24xf32>
    %216 = vector.shape_cast %215 : vector<1x1x8x24xf32> to vector<8x24xf32>
    %217 = vector.shape_cast %214 : vector<8x24xf32> to vector<1x1x8x24xf32>
    tpu.vector_store %arg10[%c0_191, %c2_192, %c0_193, %c0_194], %217 {strides = array<i32>} : memref<1x4x8x24xf32, #tpu.memory_space<vmem>>, vector<1x1x8x24xf32>,
    %c0_195 = arith.constant 0 : index
    %c3_196 = arith.constant 3 : index
    %c0_197 = arith.constant 0 : index
    %c0_198 = arith.constant 0 : index
    %218 = vector.load %arg5[%c0_195, %c3_196, %c0_197, %c0_198] : memref<1x4x8x24xf32, #tpu.memory_space<vmem>>, vector<1x1x8x24xf32>
    %219 = vector.shape_cast %218 : vector<1x1x8x24xf32> to vector<8x24xf32>
    %c0_199 = arith.constant 0 : index
    %c3_200 = arith.constant 3 : index
    %c0_201 = arith.constant 0 : index
    %c0_202 = arith.constant 0 : index
    %220 = vector.load %arg6[%c0_199, %c3_200, %c0_201, %c0_202] : memref<1x4x8x24xf32, #tpu.memory_space<vmem>>, vector<1x1x8x24xf32>
    %221 = vector.shape_cast %220 : vector<1x1x8x24xf32> to vector<8x24xf32>
    %c0_203 = arith.constant 0 : index
    %c3_204 = arith.constant 3 : index
    %c0_205 = arith.constant 0 : index
    %c0_206 = arith.constant 0 : index
    %222 = vector.load %arg7[%c0_203, %c3_204, %c0_205, %c0_206] : memref<1x4x8x24xf32, #tpu.memory_space<vmem>>, vector<1x1x8x24xf32>
    %223 = vector.shape_cast %222 : vector<1x1x8x24xf32> to vector<8x24xf32>
    %c0_207 = arith.constant 0 : index
    %c3_208 = arith.constant 3 : index
    %c0_209 = arith.constant 0 : index
    %c0_210 = arith.constant 0 : index
    %224 = vector.load %arg3[%c0_207, %c3_208, %c0_209, %c0_210] : memref<1x4x8x24xf32, #tpu.memory_space<vmem>>, vector<1x1x8x24xf32>
    %225 = vector.shape_cast %224 : vector<1x1x8x24xf32> to vector<8x24xf32>
    %226 = arith.addf %223, %225 : vector<8x24xf32>
    %c0_211 = arith.constant 0 : index
    %c3_212 = arith.constant 3 : index
    %c0_213 = arith.constant 0 : index
    %c0_214 = arith.constant 0 : index
    %227 = vector.load %arg8[%c0_211, %c3_212, %c0_213, %c0_214] : memref<1x4x8x24xf32, #tpu.memory_space<vmem>>, vector<1x1x8x24xf32>
    %228 = vector.shape_cast %227 : vector<1x1x8x24xf32> to vector<8x24xf32>
    %c0_215 = arith.constant 0 : index
    %c3_216 = arith.constant 3 : index
    %c0_217 = arith.constant 0 : index
    %c0_218 = arith.constant 0 : index
    %229 = vector.load %arg4[%c0_215, %c3_216, %c0_217, %c0_218] : memref<1x4x8x24xf32, #tpu.memory_space<vmem>>, vector<1x1x8x24xf32>
    %230 = vector.shape_cast %229 : vector<1x1x8x24xf32> to vector<8x24xf32>
    %231 = arith.addf %228, %230 : vector<8x24xf32>
    %232 = arith.mulf %219, %117 : vector<8x24xf32>
    %233 = arith.mulf %221, %120 : vector<8x24xf32>
    %234 = arith.addf %232, %233 : vector<8x24xf32>
    %235 = arith.mulf %219, %120 : vector<8x24xf32>
    %236 = arith.mulf %221, %117 : vector<8x24xf32>
    %237 = arith.subf %235, %236 : vector<8x24xf32>
    %238 = arith.subf %226, %234 : vector<8x24xf32>
    %239 = vector.broadcast %121 : f32 to vector<8x24xf32>
    %240 = arith.mulf %238, %239 : vector<8x24xf32>
    %c0_219 = arith.constant 0 : index
    %c3_220 = arith.constant 3 : index
    %c0_221 = arith.constant 0 : index
    %c0_222 = arith.constant 0 : index
    %241 = vector.load %arg9[%c0_219, %c3_220, %c0_221, %c0_222] : memref<1x4x8x24xf32, #tpu.memory_space<vmem>>, vector<1x1x8x24xf32>
    %242 = vector.shape_cast %241 : vector<1x1x8x24xf32> to vector<8x24xf32>
    %243 = vector.shape_cast %240 : vector<8x24xf32> to vector<1x1x8x24xf32>
    tpu.vector_store %arg9[%c0_219, %c3_220, %c0_221, %c0_222], %243 {strides = array<i32>} : memref<1x4x8x24xf32, #tpu.memory_space<vmem>>, vector<1x1x8x24xf32>,
    %244 = arith.subf %231, %237 : vector<8x24xf32>
    %245 = vector.broadcast %121 : f32 to vector<8x24xf32>
    %246 = arith.mulf %244, %245 : vector<8x24xf32>
    %c0_223 = arith.constant 0 : index
    %c3_224 = arith.constant 3 : index
    %c0_225 = arith.constant 0 : index
    %c0_226 = arith.constant 0 : index
    %247 = vector.load %arg10[%c0_223, %c3_224, %c0_225, %c0_226] : memref<1x4x8x24xf32, #tpu.memory_space<vmem>>, vector<1x1x8x24xf32>
    %248 = vector.shape_cast %247 : vector<1x1x8x24xf32> to vector<8x24xf32>
    %249 = vector.shape_cast %246 : vector<8x24xf32> to vector<1x1x8x24xf32>
    tpu.vector_store %arg10[%c0_223, %c3_224, %c0_225, %c0_226], %249 {strides = array<i32>} : memref<1x4x8x24xf32, #tpu.memory_space<vmem>>, vector<1x1x8x24xf32>,
    return
  }
  func.func @transform_0(%arg0: i32, %arg1: i32) -> i32 {
    %c0_i32 = arith.constant 0 : i32
    %c0_i32_0 = arith.constant 0 : i32
    return %c0_i32 : i32
  }
  func.func @transform_1(%arg0: i32, %arg1: i32) -> (i32, i32, i32, i32) {
    %c0_i32 = arith.constant 0 : i32
    %c0_i32_0 = arith.constant 0 : i32
    %c0_i32_1 = arith.constant 0 : i32
    return %arg0, %c0_i32, %arg1, %c0_i32_0 : i32, i32, i32, i32
  }
  func.func @transform_2(%arg0: i32, %arg1: i32) -> (i32, i32, i32, i32) {
    %c0_i32 = arith.constant 0 : i32
    %c0_i32_0 = arith.constant 0 : i32
    %c0_i32_1 = arith.constant 0 : i32
    return %arg0, %c0_i32, %arg1, %c0_i32_0 : i32, i32, i32, i32
  }
  func.func @transform_3(%arg0: i32, %arg1: i32) -> (i32, i32, i32, i32) {
    %c0_i32 = arith.constant 0 : i32
    %c0_i32_0 = arith.constant 0 : i32
    %c0_i32_1 = arith.constant 0 : i32
    return %arg0, %c0_i32, %arg1, %c0_i32_0 : i32, i32, i32, i32
  }
  func.func @transform_4(%arg0: i32, %arg1: i32) -> (i32, i32, i32, i32) {
    %c0_i32 = arith.constant 0 : i32
    %c0_i32_0 = arith.constant 0 : i32
    %c0_i32_1 = arith.constant 0 : i32
    return %arg0, %c0_i32, %arg1, %c0_i32_0 : i32, i32, i32, i32
  }
  func.func @transform_5(%arg0: i32, %arg1: i32) -> (i32, i32, i32, i32) {
    %c0_i32 = arith.constant 0 : i32
    %c0_i32_0 = arith.constant 0 : i32
    %c0_i32_1 = arith.constant 0 : i32
    return %arg0, %c0_i32, %arg1, %c0_i32_0 : i32, i32, i32, i32
  }
  func.func @transform_6(%arg0: i32, %arg1: i32) -> (i32, i32, i32, i32) {
    %c0_i32 = arith.constant 0 : i32
    %c0_i32_0 = arith.constant 0 : i32
    %c0_i32_1 = arith.constant 0 : i32
    return %arg0, %c0_i32, %arg1, %c0_i32_0 : i32, i32, i32, i32
  }
  func.func @transform_7(%arg0: i32, %arg1: i32) -> (i32, i32, i32, i32) {
    %c0_i32 = arith.constant 0 : i32
    %c0_i32_0 = arith.constant 0 : i32
    %c0_i32_1 = arith.constant 0 : i32
    return %arg0, %c0_i32, %arg1, %c0_i32_0 : i32, i32, i32, i32
  }
  func.func @transform_8(%arg0: i32, %arg1: i32) -> (i32, i32, i32, i32) {
    %c0_i32 = arith.constant 0 : i32
    %c0_i32_0 = arith.constant 0 : i32
    %c0_i32_1 = arith.constant 0 : i32
    return %arg0, %c0_i32, %arg1, %c0_i32_0 : i32, i32, i32, i32
  }
}

</mosaic_0001>

<llo_original>
// kernel: datanet_forward.1
$region0: #{datanet_forward.1}
  #allocation0 [shape = 'u32[]', space=smem, size = 0x4, offset = 0x4, fixed_abs, tag = 'smem constant byte address 0x4 - core index']
  #allocation1 [shape = 'u32[72,128]{1,0:T(1,128)}', space=vmem, size = 0x9000, scoped, tag = 'internal scratch']
  %s0 = inlined_call_operand.vmem [shape: f32[2], index: 0, kind: input, shape index: {}]
  %s1 = inlined_call_operand.vmem [shape: f32[2,4,8,24], index: 1, kind: input, shape index: {}]
  %s2 = inlined_call_operand.vmem [shape: f32[2,4,8,24], index: 2, kind: input, shape index: {}]
  %s3 = inlined_call_operand.vmem [shape: f32[2,4,8,24], index: 3, kind: input, shape index: {}]
  %s4 = inlined_call_operand.vmem [shape: f32[2,4,8,24], index: 4, kind: input, shape index: {}]
  %s5 = inlined_call_operand.vmem [shape: f32[2,4,8,24], index: 5, kind: input, shape index: {}]
  %s6 = inlined_call_operand.vmem [shape: f32[2,4,8,24], index: 6, kind: input, shape index: {}]
  %s7 = inlined_call_operand.vmem [shape: f32[2,4,8,24], index: 7, kind: output, shape index: {0}]
  %s8 = inlined_call_operand.vmem [shape: f32[2,4,8,24], index: 8, kind: output, shape index: {1}]
  %9 = xla_tuple %s7, %s8
  %s10 = sld [smem:[#allocation0]]
  $region73: #{datanet_forward.1} parent=0
    _
  %s12 = ssub.s32 1, %s10
  %s13 = scalar_select 0, %s12, %s10
  $region1: #{datanet_forward.1} parent=0
    #allocation2 [shape = 'u8[512]{0}', space=smem, size = 0x200, scoped, tag = 'input window, operand 0, single buffered']
    #allocation3 [shape = 's32[2]{0}', space=sflag, size = 0x8, scoped, tag = 'scoped memory for datanet_forward.1']
    %14 = vsyncpa [#allocation3], 0
    loop: start=0, step=1, limit=4
    $region2: #{datanet_forward.1} parent=1 // loop_pre_header
      _
    $region3: #{datanet_forward.1} parent=1 // loop_header
      %s16 = sphi 0, %s20
      %p17 = scmp.ge.s32.totalorder %s16, 4
      %s23 = sphi 0, %s35
      %s24 = sphi 0, %s31
      %s25 = sphi 0, %s23
      %s26 = sphi 0, %s24
      %s27 = sphi 0, %s25
      %s28 = sphi 0, %s26
      %s36 = sphi 0, %s36
      %s38 = sphi 0, %s36
      %s39 = sphi 0, %s38
      %s53 = sphi 0, %s39
      %s61 = sphi 0, %s63
      %s64 = sphi 0, %s61
      %s65 = sphi 0, %s64
      %s81 = sphi 0, %s65
      %s89 = sphi 0, %s91
      %s92 = sphi 0, %s89
      %s93 = sphi 0, %s92
      %s109 = sphi 0, %s93
      %s117 = sphi 0, %s119
      %s120 = sphi 0, %s117
      %s121 = sphi 0, %s120
      %s137 = sphi 0, %s121
      %s145 = sphi 0, %s147
      %s148 = sphi 0, %s145
      %s149 = sphi 0, %s148
      %s165 = sphi 0, %s149
      %s173 = sphi 0, %s175
      %s176 = sphi 0, %s173
      %s177 = sphi 0, %s176
      %s193 = sphi 0, %s177
      %s201 = sphi 0, %s203
      %s204 = sphi 0, %s201
      %s205 = sphi 0, %s204
      %s221 = sphi 0, %s205
      %s229 = sphi 0, %s231
      %s232 = sphi 0, %s229
      %s233 = sphi 0, %s232
      %s249 = sphi 0, %s233
      %s257 = sphi 0, %s259
      %s260 = sphi 0, %s257
      %s261 = sphi 0, %s260
      %s277 = sphi 0, %s261
    $region4: #{datanet_forward.1} parent=1 // loop_header_branch
      %19 = sbr.rel (%p17) target = $region8
    $region5: #{datanet_forward.1} parent=1 // loop_body
      %s21 = ssub.s32 %s16, 1
      %s22 = ssub.s32 %s16, 2
      %s29 = sadd.s32 1, %s24
      %p30 = scmp.ge.s32.totalorder %s29, 1
      %s31 = scalar_select %p30, 0, %s29
      %s32 = sadd.s32 1, %s23
      %s33 = scalar_select %p30, %s32, %s23
      %p34 = scmp.ge.s32.totalorder %s33, 2
      %s35 = scalar_select %p34, 0, %s33
      %s37 = sadd.s32 %s36, 1
      %p40 = scmp.eq.s32.totalorder %s16, 1
      %p41 = scmp.ne.s32.totalorder %s36, %s38
      %p42 = scmp.eq.s32.totalorder %s16, 0
      %p43 = por %p41, %p42
      %p44 = scmp.ne.s32.totalorder %s36, %s38
      %p45 = scmp.eq.s32.totalorder %s21, 1
      %p46 = por %p44, %p45
      %p47 = scmp.ne.s32.totalorder %s38, %s39
      %p48 = scmp.eq.s32.totalorder %s21, 0
      %p49 = por %p47, %p48
      %p50 = scmp.ne.s32.totalorder %s38, %s39
      %p51 = scmp.eq.s32.totalorder %s22, 1
      %p52 = por %p50, %p51
      %p54 = scmp.ne.s32.totalorder %s39, %s53
      %p55 = scmp.eq.s32.totalorder %s22, 0
      %p56 = por %p54, %p55
      %s57 = ssub.s32 %s23, %s35
      %s58 = ssub.s32 %s24, %s31
      %s59 = sor.u32 %s57, %s58
      %p60 = scmp.eq.s32.totalorder %s59, 0
      %s62 = sadd.s32 %s61, 1
      %s63 = scalar_select %p60, %s61, %s62
      %p66 = pneg %p60
      %p67 = scmp.eq.s32.totalorder %s16, 1
      %p68 = por %p66, %p67
      %p69 = scmp.ne.s32.totalorder %s61, %s64
      %p70 = scmp.eq.s32.totalorder %s16, 0
      %p71 = por %p69, %p70
      %p72 = scmp.ne.s32.totalorder %s61, %s64
      %p73 = scmp.eq.s32.totalorder %s21, 1
      %p74 = por %p72, %p73
      %p75 = scmp.ne.s32.totalorder %s64, %s65
      %p76 = scmp.eq.s32.totalorder %s21, 0
      %p77 = por %p75, %p76
      %p78 = scmp.ne.s32.totalorder %s64, %s65
      %p79 = scmp.eq.s32.totalorder %s22, 1
      %p80 = por %p78, %p79
      %p82 = scmp.ne.s32.totalorder %s65, %s81
      %p83 = scmp.eq.s32.totalorder %s22, 0
      %p84 = por %p82, %p83
      %s85 = ssub.s32 %s23, %s35
      %s86 = ssub.s32 %s24, %s31
      %s87 = sor.u32 %s85, %s86
      %p88 = scmp.eq.s32.totalorder %s87, 0
      %s90 = sadd.s32 %s89, 1
      %s91 = scalar_select %p88, %s89, %s90
      %p94 = pneg %p88
      %p95 = scmp.eq.s32.totalorder %s16, 1
      %p96 = por %p94, %p95
      %p97 = scmp.ne.s32.totalorder %s89, %s92
      %p98 = scmp.eq.s32.totalorder %s16, 0
      %p99 = por %p97, %p98
      %p100 = scmp.ne.s32.totalorder %s89, %s92
      %p101 = scmp.eq.s32.totalorder %s21, 1
      %p102 = por %p100, %p101
      %p103 = scmp.ne.s32.totalorder %s92, %s93
      %p104 = scmp.eq.s32.totalorder %s21, 0
      %p105 = por %p103, %p104
      %p106 = scmp.ne.s32.totalorder %s92, %s93
      %p107 = scmp.eq.s32.totalorder %s22, 1
      %p108 = por %p106, %p107
      %p110 = scmp.ne.s32.totalorder %s93, %s109
      %p111 = scmp.eq.s32.totalorder %s22, 0
      %p112 = por %p110, %p111
      %s113 = ssub.s32 %s23, %s35
      %s114 = ssub.s32 %s24, %s31
      %s115 = sor.u32 %s113, %s114
      %p116 = scmp.eq.s32.totalorder %s115, 0
      %s118 = sadd.s32 %s117, 1
      %s119 = scalar_select %p116, %s117, %s118
      %p122 = pneg %p116
      %p123 = scmp.eq.s32.totalorder %s16, 1
      %p124 = por %p122, %p123
      %p125 = scmp.ne.s32.totalorder %s117, %s120
      %p126 = scmp.eq.s32.totalorder %s16, 0
      %p127 = por %p125, %p126
      %p128 = scmp.ne.s32.totalorder %s117, %s120
      %p129 = scmp.eq.s32.totalorder %s21, 1
      %p130 = por %p128, %p129
      %p131 = scmp.ne.s32.totalorder %s120, %s121
      %p132 = scmp.eq.s32.totalorder %s21, 0
      %p133 = por %p131, %p132
      %p134 = scmp.ne.s32.totalorder %s120, %s121
      %p135 = scmp.eq.s32.totalorder %s22, 1
      %p136 = por %p134, %p135
      %p138 = scmp.ne.s32.totalorder %s121, %s137
      %p139 = scmp.eq.s32.totalorder %s22, 0
      %p140 = por %p138, %p139
      %s141 = ssub.s32 %s23, %s35
      %s142 = ssub.s32 %s24, %s31
      %s143 = sor.u32 %s141, %s142
      %p144 = scmp.eq.s32.totalorder %s143, 0
      %s146 = sadd.s32 %s145, 1
      %s147 = scalar_select %p144, %s145, %s146
      %p150 = pneg %p144
      %p151 = scmp.eq.s32.totalorder %s16, 1
      %p152 = por %p150, %p151
      %p153 = scmp.ne.s32.totalorder %s145, %s148
      %p154 = scmp.eq.s32.totalorder %s16, 0
      %p155 = por %p153, %p154
      %p156 = scmp.ne.s32.totalorder %s145, %s148
      %p157 = scmp.eq.s32.totalorder %s21, 1
      %p158 = por %p156, %p157
      %p159 = scmp.ne.s32.totalorder %s148, %s149
      %p160 = scmp.eq.s32.totalorder %s21, 0
      %p161 = por %p159, %p160
      %p162 = scmp.ne.s32.totalorder %s148, %s149
      %p163 = scmp.eq.s32.totalorder %s22, 1
      %p164 = por %p162, %p163
      %p166 = scmp.ne.s32.totalorder %s149, %s165
      %p167 = scmp.eq.s32.totalorder %s22, 0
      %p168 = por %p166, %p167
      %s169 = ssub.s32 %s23, %s35
      %s170 = ssub.s32 %s24, %s31
      %s171 = sor.u32 %s169, %s170
      %p172 = scmp.eq.s32.totalorder %s171, 0
      %s174 = sadd.s32 %s173, 1
      %s175 = scalar_select %p172, %s173, %s174
      %p178 = pneg %p172
      %p179 = scmp.eq.s32.totalorder %s16, 1
      %p180 = por %p178, %p179
      %p181 = scmp.ne.s32.totalorder %s173, %s176
      %p182 = scmp.eq.s32.totalorder %s16, 0
      %p183 = por %p181, %p182
      %p184 = scmp.ne.s32.totalorder %s173, %s176
      %p185 = scmp.eq.s32.totalorder %s21, 1
      %p186 = por %p184, %p185
      %p187 = scmp.ne.s32.totalorder %s176, %s177
      %p188 = scmp.eq.s32.totalorder %s21, 0
      %p189 = por %p187, %p188
      %p190 = scmp.ne.s32.totalorder %s176, %s177
      %p191 = scmp.eq.s32.totalorder %s22, 1
      %p192 = por %p190, %p191
      %p194 = scmp.ne.s32.totalorder %s177, %s193
      %p195 = scmp.eq.s32.totalorder %s22, 0
      %p196 = por %p194, %p195
      %s197 = ssub.s32 %s23, %s35
      %s198 = ssub.s32 %s24, %s31
      %s199 = sor.u32 %s197, %s198
      %p200 = scmp.eq.s32.totalorder %s199, 0
      %s202 = sadd.s32 %s201, 1
      %s203 = scalar_select %p200, %s201, %s202
      %p206 = pneg %p200
      %p207 = scmp.eq.s32.totalorder %s16, 1
      %p208 = por %p206, %p207
      %p209 = scmp.ne.s32.totalorder %s201, %s204
      %p210 = scmp.eq.s32.totalorder %s16, 0
      %p211 = por %p209, %p210
      %p212 = scmp.ne.s32.totalorder %s201, %s204
      %p213 = scmp.eq.s32.totalorder %s21, 1
      %p214 = por %p212, %p213
      %p215 = scmp.ne.s32.totalorder %s204, %s205
      %p216 = scmp.eq.s32.totalorder %s21, 0
      %p217 = por %p215, %p216
      %p218 = scmp.ne.s32.totalorder %s204, %s205
      %p219 = scmp.eq.s32.totalorder %s22, 1
      %p220 = por %p218, %p219
      %p222 = scmp.ne.s32.totalorder %s205, %s221
      %p223 = scmp.eq.s32.totalorder %s22, 0
      %p224 = por %p222, %p223
      %s225 = ssub.s32 %s23, %s35
      %s226 = ssub.s32 %s24, %s31
      %s227 = sor.u32 %s225, %s226
      %p228 = scmp.eq.s32.totalorder %s227, 0
      %s230 = sadd.s32 %s229, 1
      %s231 = scalar_select %p228, %s229, %s230
      %p234 = pneg %p228
      %p235 = scmp.eq.s32.totalorder %s16, 1
      %p236 = por %p234, %p235
      %p237 = scmp.ne.s32.totalorder %s229, %s232
      %p238 = scmp.eq.s32.totalorder %s16, 0
      %p239 = por %p237, %p238
      %p240 = scmp.ne.s32.totalorder %s229, %s232
      %p241 = scmp.eq.s32.totalorder %s21, 1
      %p242 = por %p240, %p241
      %p243 = scmp.ne.s32.totalorder %s232, %s233
      %p244 = scmp.eq.s32.totalorder %s21, 0
      %p245 = por %p243, %p244
      %p246 = scmp.ne.s32.totalorder %s232, %s233
      %p247 = scmp.eq.s32.totalorder %s22, 1
      %p248 = por %p246, %p247
      %p250 = scmp.ne.s32.totalorder %s233, %s249
      %p251 = scmp.eq.s32.totalorder %s22, 0
      %p252 = por %p250, %p251
      %s253 = ssub.s32 %s23, %s35
      %s254 = ssub.s32 %s24, %s31
      %s255 = sor.u32 %s253, %s254
      %p256 = scmp.eq.s32.totalorder %s255, 0
      %s258 = sadd.s32 %s257, 1
      %s259 = scalar_select %p256, %s257, %s258
      %p262 = pneg %p256
      %p263 = scmp.eq.s32.totalorder %s16, 1
      %p264 = por %p262, %p263
      %p265 = scmp.ne.s32.totalorder %s257, %s260
      %p266 = scmp.eq.s32.totalorder %s16, 0
      %p267 = por %p265, %p266
      %p268 = scmp.ne.s32.totalorder %s257, %s260
      %p269 = scmp.eq.s32.totalorder %s21, 1
      %p270 = por %p268, %p269
      %p271 = scmp.ne.s32.totalorder %s260, %s261
      %p272 = scmp.eq.s32.totalorder %s21, 0
      %p273 = por %p271, %p272
      %p274 = scmp.ne.s32.totalorder %s260, %s261
      %p275 = scmp.eq.s32.totalorder %s22, 1
      %p276 = por %p274, %p275
      %p278 = scmp.ne.s32.totalorder %s261, %s277
      %p279 = scmp.eq.s32.totalorder %s22, 0
      %p280 = por %p278, %p279
      %p281 = scmp.le.s32.totalorder 1, %s16
      %p282 = scmp.lt.s32.totalorder %s16, 3
      %p283 = pnand %p281, %p282
      %p284 = pneg %p283
      // Predicated region
      $region9: #{datanet_forward.1} parent=5 // pred_check
        _
      $region10: #{datanet_forward.1} parent=5 // pred_check_branch
        %286 = sbr.rel (%p283) target = $region12
      $region11: #{datanet_forward.1} parent=5 // pred_region
        %s287 = ssub.s32 %s16, 1
        // Predicated region
        $region13: #{datanet_forward.1} parent=11 // pred_check
          %p288 = pneg %p49
        $region14: #{datanet_forward.1} parent=11 // pred_check_branch
          %290 = sbr.rel (%p288) target = $region16
        $region15: #{datanet_forward.1} parent=11 // pred_region
          %292 = vsyncadd [#allocation3], 0
          %s294 = sshll.u32 %s0, 4
          %s295 = int_to_ptr.vmem [resolvable:$true] %s294
          %297 = dma.vmem_to_smem %s295, 16, [#allocation2], [#allocation3]
        $region16: #{datanet_forward.1} parent=11 // pred_fallthru
          _
      $region12: #{datanet_forward.1} parent=5 // pred_fallthru
        _
      %p298 = scmp.lt.s32.totalorder %s16, 2
      // Predicated region
      $region17: #{datanet_forward.1} parent=5 // pred_check
        %p299 = pneg %p298
      $region18: #{datanet_forward.1} parent=5 // pred_check_branch
        %301 = sbr.rel (%p299) target = $region20
      $region19: #{datanet_forward.1} parent=5 // pred_region
        // Predicated region
        $region21: #{datanet_forward.1} parent=19 // pred_check
          %p302 = pneg %p71
        $region22: #{datanet_forward.1} parent=19 // pred_check_branch
          %304 = sbr.rel (%p302) target = $region24
        $region23: #{datanet_forward.1} parent=19 // pred_region
          %p305 = scmp.lt.s32.totalorder %s23, 1
          %s306 = scalar_select %p305, %s23, 1
          %p307 = scmp.lt.s32.totalorder %s24, 0
          %s308 = scalar_select %p307, %s24, 0
          %s309 = smul.addr %s306, 4
          %s310 = sadd.s32 %s308, %s309
          %s311 = smul.addr %s310, 8
          %s312 = scalar_lea.vmem %s1, %s311
        $region24: #{datanet_forward.1} parent=19 // pred_fallthru
          _
        // Predicated region
        $region25: #{datanet_forward.1} parent=19 // pred_check
          %p313 = pneg %p99
        $region26: #{datanet_forward.1} parent=19 // pred_check_branch
          %315 = sbr.rel (%p313) target = $region28
        $region27: #{datanet_forward.1} parent=19 // pred_region
          %p316 = scmp.lt.s32.totalorder %s23, 1
          %s317 = scalar_select %p316, %s23, 1
          %p318 = scmp.lt.s32.totalorder %s24, 0
          %s319 = scalar_select %p318, %s24, 0
          %s320 = smul.addr %s317, 4
          %s321 = sadd.s32 %s319, %s320
          %s322 = smul.addr %s321, 8
          %s323 = scalar_lea.vmem %s2, %s322
        $region28: #{datanet_forward.1} parent=19 // pred_fallthru
          _
        // Predicated region
        $region29: #{datanet_forward.1} parent=19 // pred_check
          %p324 = pneg %p127
        $region30: #{datanet_forward.1} parent=19 // pred_check_branch
          %326 = sbr.rel (%p324) target = $region32
        $region31: #{datanet_forward.1} parent=19 // pred_region
          %p327 = scmp.lt.s32.totalorder %s23, 1
          %s328 = scalar_select %p327, %s23, 1
          %p329 = scmp.lt.s32.totalorder %s24, 0
          %s330 = scalar_select %p329, %s24, 0
          %s331 = smul.addr %s328, 4
          %s332 = sadd.s32 %s330, %s331
          %s333 = smul.addr %s332, 8
          %s334 = scalar_lea.vmem %s3, %s333
        $region32: #{datanet_forward.1} parent=19 // pred_fallthru
          _
        // Predicated region
        $region33: #{datanet_forward.1} parent=19 // pred_check
          %p335 = pneg %p155
        $region34: #{datanet_forward.1} parent=19 // pred_check_branch
          %337 = sbr.rel (%p335) target = $region36
        $region35: #{datanet_forward.1} parent=19 // pred_region
          %p338 = scmp.lt.s32.totalorder %s23, 1
          %s339 = scalar_select %p338, %s23, 1
          %p340 = scmp.lt.s32.totalorder %s24, 0
          %s341 = scalar_select %p340, %s24, 0
          %s342 = smul.addr %s339, 4
          %s343 = sadd.s32 %s341, %s342
          %s344 = smul.addr %s343, 8
          %s345 = scalar_lea.vmem %s4, %s344
        $region36: #{datanet_forward.1} parent=19 // pred_fallthru
          _
        // Predicated region
        $region37: #{datanet_forward.1} parent=19 // pred_check
          %p346 = pneg %p183
        $region38: #{datanet_forward.1} parent=19 // pred_check_branch
          %348 = sbr.rel (%p346) target = $region40
        $region39: #{datanet_forward.1} parent=19 // pred_region
          %p349 = scmp.lt.s32.totalorder %s23, 1
          %s350 = scalar_select %p349, %s23, 1
          %p351 = scmp.lt.s32.totalorder %s24, 0
          %s352 = scalar_select %p351, %s24, 0
          %s353 = smul.addr %s350, 4
          %s354 = sadd.s32 %s352, %s353
          %s355 = smul.addr %s354, 8
          %s356 = scalar_lea.vmem %s5, %s355
        $region40: #{datanet_forward.1} parent=19 // pred_fallthru
          _
        // Predicated region
        $region41: #{datanet_forward.1} parent=19 // pred_check
          %p357 = pneg %p211
        $region42: #{datanet_forward.1} parent=19 // pred_check_branch
          %359 = sbr.rel (%p357) target = $region44
        $region43: #{datanet_forward.1} parent=19 // pred_region
          %p360 = scmp.lt.s32.totalorder %s23, 1
          %s361 = scalar_select %p360, %s23, 1
          %p362 = scmp.lt.s32.totalorder %s24, 0
          %s363 = scalar_select %p362, %s24, 0
          %s364 = smul.addr %s361, 4
          %s365 = sadd.s32 %s363, %s364
          %s366 = smul.addr %s365, 8
          %s367 = scalar_lea.vmem %s6, %s366
        $region44: #{datanet_forward.1} parent=19 // pred_fallthru
          _
      $region20: #{datanet_forward.1} parent=5 // pred_fallthru
        _
      %p368 = scmp.le.s32.totalorder 1, %s16
      %p369 = scmp.lt.s32.totalorder %s16, 3
      %p370 = pnand %p368, %p369
      %p371 = pneg %p370
      // Predicated region
      $region45: #{datanet_forward.1} parent=5 // pred_check
        _
      $region46: #{datanet_forward.1} parent=5 // pred_check_branch
        %373 = sbr.rel (%p370) target = $region48
      $region47: #{datanet_forward.1} parent=5 // pred_region
        %s374 = ssub.s32 %s16, 1
        // Predicated region
        $region49: #{datanet_forward.1} parent=47 // pred_check
          %p375 = pneg %p49
        $region50: #{datanet_forward.1} parent=47 // pred_check_branch
          %377 = sbr.rel (%p375) target = $region52
        $region51: #{datanet_forward.1} parent=47 // pred_region
          %379 = dma.done [#allocation3], 16
        $region52: #{datanet_forward.1} parent=47 // pred_fallthru
          _
        %380 = sfence
        %p381 = pneg %p49
        %p382 = pneg %p46
        %p383 = scmp.lt.s32.totalorder %s25, 1
        %s384 = scalar_select %p383, %s25, 1
        %p385 = scmp.lt.s32.totalorder %s26, 0
        %s386 = scalar_select %p385, %s26, 0
        %s387 = smul.addr %s384, 4
        %s388 = sadd.s32 %s386, %s387
        %s389 = smul.addr %s388, 8
        %s390 = scalar_lea.vmem %s1, %s389
        %p391 = pneg %p77
        %p392 = pneg %p74
        %p393 = scmp.lt.s32.totalorder %s25, 1
        %s394 = scalar_select %p393, %s25, 1
        %p395 = scmp.lt.s32.totalorder %s26, 0
        %s396 = scalar_select %p395, %s26, 0
        %s397 = smul.addr %s394, 4
        %s398 = sadd.s32 %s396, %s397
        %s399 = smul.addr %s398, 8
        %s400 = scalar_lea.vmem %s2, %s399
        %p401 = pneg %p105
        %p402 = pneg %p102
        %p403 = scmp.lt.s32.totalorder %s25, 1
        %s404 = scalar_select %p403, %s25, 1
        %p405 = scmp.lt.s32.totalorder %s26, 0
        %s406 = scalar_select %p405, %s26, 0
        %s407 = smul.addr %s404, 4
        %s408 = sadd.s32 %s406, %s407
        %s409 = smul.addr %s408, 8
        %s410 = scalar_lea.vmem %s3, %s409
        %p411 = pneg %p133
        %p412 = pneg %p130
        %p413 = scmp.lt.s32.totalorder %s25, 1
        %s414 = scalar_select %p413, %s25, 1
        %p415 = scmp.lt.s32.totalorder %s26, 0
        %s416 = scalar_select %p415, %s26, 0
        %s417 = smul.addr %s414, 4
        %s418 = sadd.s32 %s416, %s417
        %s419 = smul.addr %s418, 8
        %s420 = scalar_lea.vmem %s4, %s419
        %p421 = pneg %p161
        %p422 = pneg %p158
        %p423 = scmp.lt.s32.totalorder %s25, 1
        %s424 = scalar_select %p423, %s25, 1
        %p425 = scmp.lt.s32.totalorder %s26, 0
        %s426 = scalar_select %p425, %s26, 0
        %s427 = smul.addr %s424, 4
        %s428 = sadd.s32 %s426, %s427
        %s429 = smul.addr %s428, 8
        %s430 = scalar_lea.vmem %s5, %s429
        %p431 = pneg %p189
        %p432 = pneg %p186
        %p433 = scmp.lt.s32.totalorder %s25, 1
        %s434 = scalar_select %p433, %s25, 1
        %p435 = scmp.lt.s32.totalorder %s26, 0
        %s436 = scalar_select %p435, %s26, 0
        %s437 = smul.addr %s434, 4
        %s438 = sadd.s32 %s436, %s437
        %s439 = smul.addr %s438, 8
        %s440 = scalar_lea.vmem %s6, %s439
        %p441 = pneg %p217
        %p442 = pneg %p214
        %p443 = pneg %p245
        %p444 = pneg %p242
        %p445 = scmp.lt.s32.totalorder %s25, 1
        %s446 = scalar_select %p445, %s25, 1
        %p447 = scmp.lt.s32.totalorder %s26, 0
        %s448 = scalar_select %p447, %s26, 0
        %s449 = smul.addr %s446, 4
        %s450 = sadd.s32 %s448, %s449
        %s451 = smul.addr %s450, 8
        %s452 = scalar_lea.vmem %s7, %s451
        %p453 = pneg %p273
        %p454 = pneg %p270
        %p455 = scmp.lt.s32.totalorder %s25, 1
        %s456 = scalar_select %p455, %s25, 1
        %p457 = scmp.lt.s32.totalorder %s26, 0
        %s458 = scalar_select %p457, %s26, 0
        %s459 = smul.addr %s456, 4
        %s460 = sadd.s32 %s458, %s459
        %s461 = smul.addr %s460, 8
        %s462 = scalar_lea.vmem %s8, %s461
        %p463 = scmp.lt.s32.totalorder %s25, 1
        %s464 = scalar_select %p463, %s25, 1
        %p465 = scmp.lt.s32.totalorder %s26, 0
        %s466 = scalar_select %p465, %s26, 0
        %s467 = smul.addr %s464, 4
        %s468 = sadd.s32 %s466, %s467
        %s469 = smul.addr %s468, 8
        %s470 = scalar_lea.vmem %s1, %s469
        %p471 = scmp.lt.s32.totalorder %s25, 1
        %s472 = scalar_select %p471, %s25, 1
        %p473 = scmp.lt.s32.totalorder %s26, 0
        %s474 = scalar_select %p473, %s26, 0
        %s475 = smul.addr %s472, 4
        %s476 = sadd.s32 %s474, %s475
        %s477 = smul.addr %s476, 8
        %s478 = scalar_lea.vmem %s2, %s477
        %p479 = scmp.lt.s32.totalorder %s25, 1
        %s480 = scalar_select %p479, %s25, 1
        %p481 = scmp.lt.s32.totalorder %s26, 0
        %s482 = scalar_select %p481, %s26, 0
        %s483 = smul.addr %s480, 4
        %s484 = sadd.s32 %s482, %s483
        %s485 = smul.addr %s484, 8
        %s486 = scalar_lea.vmem %s3, %s485
        %p487 = scmp.lt.s32.totalorder %s25, 1
        %s488 = scalar_select %p487, %s25, 1
        %p489 = scmp.lt.s32.totalorder %s26, 0
        %s490 = scalar_select %p489, %s26, 0
        %s491 = smul.addr %s488, 4
        %s492 = sadd.s32 %s490, %s491
        %s493 = smul.addr %s492, 8
        %s494 = scalar_lea.vmem %s4, %s493
        %p495 = scmp.lt.s32.totalorder %s25, 1
        %s496 = scalar_select %p495, %s25, 1
        %p497 = scmp.lt.s32.totalorder %s26, 0
        %s498 = scalar_select %p497, %s26, 0
        %s499 = smul.addr %s496, 4
        %s500 = sadd.s32 %s498, %s499
        %s501 = smul.addr %s500, 8
        %s502 = scalar_lea.vmem %s5, %s501
        %p503 = scmp.lt.s32.totalorder %s25, 1
        %s504 = scalar_select %p503, %s25, 1
        %p505 = scmp.lt.s32.totalorder %s26, 0
        %s506 = scalar_select %p505, %s26, 0
        %s507 = smul.addr %s504, 4
        %s508 = sadd.s32 %s506, %s507
        %s509 = smul.addr %s508, 8
        %s510 = scalar_lea.vmem %s6, %s509
        %p511 = scmp.lt.s32.totalorder %s25, 1
        %s512 = scalar_select %p511, %s25, 1
        %p513 = scmp.lt.s32.totalorder %s26, 0
        %s514 = scalar_select %p513, %s26, 0
        %s515 = smul.addr %s512, 4
        %s516 = sadd.s32 %s514, %s515
        %s517 = smul.addr %s516, 8
        %s518 = scalar_lea.vmem %s7, %s517
        %p519 = scmp.lt.s32.totalorder %s25, 1
        %s520 = scalar_select %p519, %s25, 1
        %p521 = scmp.lt.s32.totalorder %s26, 0
        %s522 = scalar_select %p521, %s26, 0
        %s523 = smul.addr %s520, 4
        %s524 = sadd.s32 %s522, %s523
        %s525 = smul.addr %s524, 8
        %s526 = scalar_lea.vmem %s8, %s525
        %s527 = sld [smem:[#allocation2 + %s25]]
        %v528 = vld [vmem:[%s486] sm:$0xff]
        %v529 = vld [vmem:[%s494] sm:$0xff]
        %v530 = vld [vmem:[%s502] sm:$0xff]
        %v531 = vld [vmem:[%s470] sm:$0xff]
        %v532 = vadd.f32 %v530, %v531
        %v533 = vld [vmem:[%s510] sm:$0xff]
        %v534 = vld [vmem:[%s478] sm:$0xff]
        %v535 = vadd.f32 %v533, %v534
        %v536 = vmul.f32 %v528, %v532
        %v537 = vmul.f32 %v529, %v535
        %v538 = vsub.f32 %v536, %v537
        %v539 = vadd.f32 %v538, 0.0
        %v540 = vmul.f32 %v528, %v535
        %v541 = vmul.f32 %v529, %v532
        %v542 = vadd.f32 %v540, %v541
        %v543 = vadd.f32 %v542, 0.0
        %v544 = vmul.f32 %v528, %v528
        %v545 = vmul.f32 %v529, %v529
        %v546 = vadd.f32 %v544, %v545
        %v547 = vadd.f32 %v546, 0.0
        %s548 = scalar_lea.vmem %s486, 8
        %v549 = vld [vmem:[%s548] sm:$0xff]
        %s550 = scalar_lea.vmem %s494, 8
        %v551 = vld [vmem:[%s550] sm:$0xff]
        %s552 = scalar_lea.vmem %s502, 8
        %v553 = vld [vmem:[%s552] sm:$0xff]
        %s554 = scalar_lea.vmem %s470, 8
        %v555 = vld [vmem:[%s554] sm:$0xff]
        %v556 = vadd.f32 %v553, %v555
        %s557 = scalar_lea.vmem %s510, 8
        %v558 = vld [vmem:[%s557] sm:$0xff]
        %s559 = scalar_lea.vmem %s478, 8
        %v560 = vld [vmem:[%s559] sm:$0xff]
        %v561 = vadd.f32 %v558, %v560
        %v562 = vmul.f32 %v549, %v556
        %v563 = vmul.f32 %v551, %v561
        %v564 = vsub.f32 %v562, %v563
        %v565 = vadd.f32 %v539, %v564
        %v566 = vmul.f32 %v549, %v561
        %v567 = vmul.f32 %v551, %v556
        %v568 = vadd.f32 %v566, %v567
        %v569 = vadd.f32 %v543, %v568
        %v570 = vmul.f32 %v549, %v549
        %v571 = vmul.f32 %v551, %v551
        %v572 = vadd.f32 %v570, %v571
        %v573 = vadd.f32 %v547, %v572
        %s574 = scalar_lea.vmem %s486, 16
        %v575 = vld [vmem:[%s574] sm:$0xff]
        %s576 = scalar_lea.vmem %s494, 16
        %v577 = vld [vmem:[%s576] sm:$0xff]
        %s578 = scalar_lea.vmem %s502, 16
        %v579 = vld [vmem:[%s578] sm:$0xff]
        %s580 = scalar_lea.vmem %s470, 16
        %v581 = vld [vmem:[%s580] sm:$0xff]
        %v582 = vadd.f32 %v579, %v581
        %s583 = scalar_lea.vmem %s510, 16
        %v584 = vld [vmem:[%s583] sm:$0xff]
        %s585 = scalar_lea.vmem %s478, 16
        %v586 = vld [vmem:[%s585] sm:$0xff]
        %v587 = vadd.f32 %v584, %v586
        %v588 = vmul.f32 %v575, %v582
        %v589 = vmul.f32 %v577, %v587
        %v590 = vsub.f32 %v588, %v589
        %v591 = vadd.f32 %v565, %v590
        %v592 = vmul.f32 %v575, %v587
        %v593 = vmul.f32 %v577, %v582
        %v594 = vadd.f32 %v592, %v593
        %v595 = vadd.f32 %v569, %v594
        %v596 = vmul.f32 %v575, %v575
        %v597 = vmul.f32 %v577, %v577
        %v598 = vadd.f32 %v596, %v597
        %v599 = vadd.f32 %v573, %v598
        %s600 = scalar_lea.vmem %s486, 24
        %v601 = vld [vmem:[%s600] sm:$0xff]
        %s602 = scalar_lea.vmem %s494, 24
        %v603 = vld [vmem:[%s602] sm:$0xff]
        %s604 = scalar_lea.vmem %s502, 24
        %v605 = vld [vmem:[%s604] sm:$0xff]
        %s606 = scalar_lea.vmem %s470, 24
        %v607 = vld [vmem:[%s606] sm:$0xff]
        %v608 = vadd.f32 %v605, %v607
        %s609 = scalar_lea.vmem %s510, 24
        %v610 = vld [vmem:[%s609] sm:$0xff]
        %s611 = scalar_lea.vmem %s478, 24
        %v612 = vld [vmem:[%s611] sm:$0xff]
        %v613 = vadd.f32 %v610, %v612
        %v614 = vmul.f32 %v601, %v608
        %v615 = vmul.f32 %v603, %v613
        %v616 = vsub.f32 %v614, %v615
        %v617 = vadd.f32 %v591, %v616
        %v618 = vmul.f32 %v601, %v613
        %v619 = vmul.f32 %v603, %v608
        %v620 = vadd.f32 %v618, %v619
        %v621 = vadd.f32 %v595, %v620
        %v622 = vmul.f32 %v601, %v601
        %v623 = vmul.f32 %v603, %v603
        %v624 = vadd.f32 %v622, %v623
        %v625 = vadd.f32 %v599, %v624
        %v626 = vmul.f32 %v625, 0.25
        %v627 = vstv %s527
        %v628 = vadd.f32 %v626, %v627
        %v629 = vrcp.pop %v628
        %v630 = vmul.f32 %v628, %v629
        %v631 = vsub.f32 1.0, %v630
        %v632 = vmul.f32 %v629, %v631
        %v633 = vadd.f32 %v629, %v632
        %vm634 = vweird.f32 %v628
        %vm635 = vweird.f32 %v629
        %vm636 = vmor %vm634, %vm635
        %v637 = vsel %vm636, %v629, %v633
        %v638 = vand.u32 2147483647, %v628
        %vm639 = vcmp.eq.f32.partialorder %v638, 8.507059e+37
        %v640 = vand.u32 %v628, 2147483648
        %v641 = vor.u32 1.1754944e-38, %v640
        %v642 = vsel %vm639, %v641, %v637
        %v643 = vmul.f32 1.0, %v642
        %v644 = vmul.f32 %v617, 0.25
        %v645 = vmul.f32 %v644, %v643
        %v646 = vmul.f32 %v621, 0.25
        %v647 = vmul.f32 %v646, %v643
        %v648 = vstv %s527
        %v649 = vrcp.pop %v648
        %v650 = vmul.f32 %v648, %v649
        %v651 = vsub.f32 1.0, %v650
        %v652 = vmul.f32 %v649, %v651
        %v653 = vadd.f32 %v649, %v652
        %vm654 = vweird.f32 %v648
        %vm655 = vweird.f32 %v649
        %vm656 = vmor %vm654, %vm655
        %v657 = vsel %vm656, %v649, %v653
        %v658 = vand.u32 2147483647, %v648
        %vm659 = vcmp.eq.f32.partialorder %v658, 8.507059e+37
        %v660 = vand.u32 %v648, 2147483648
        %v661 = vor.u32 1.1754944e-38, %v660
        %v662 = vsel %vm659, %v661, %v657
        %s663 = vtos %v662
        %v664 = vmul.f32 %v528, %v645
        %v665 = vmul.f32 %v529, %v647
        %v666 = vadd.f32 %v664, %v665
        %v667 = vmul.f32 %v528, %v647
        %v668 = vmul.f32 %v529, %v645
        %v669 = vsub.f32 %v667, %v668
        %v670 = vsub.f32 %v532, %v666
        %v671 = vstv %s663
        %v672 = vmul.f32 %v670, %v671
        %vm673 = vcmask 195584
        %674 = vst.msk [vmem:[%s518] sm:$0xff] %vm673, %v672
        %v675 = vsub.f32 %v535, %v669
        %v676 = vmul.f32 %v675, %v671
        %677 = vst.msk [vmem:[%s526] sm:$0xff] %vm673, %v676
        %v678 = vld [vmem:[%s548] sm:$0xff]
        %v679 = vld [vmem:[%s550] sm:$0xff]
        %v680 = vld [vmem:[%s552] sm:$0xff]
        %v681 = vld [vmem:[%s554] sm:$0xff]
        %v682 = vadd.f32 %v680, %v681
        %v683 = vld [vmem:[%s557] sm:$0xff]
        %v684 = vld [vmem:[%s559] sm:$0xff]
        %v685 = vadd.f32 %v683, %v684
        %v686 = vmul.f32 %v678, %v645
        %v687 = vmul.f32 %v679, %v647
        %v688 = vadd.f32 %v686, %v687
        %v689 = vmul.f32 %v678, %v647
        %v690 = vmul.f32 %v679, %v645
        %v691 = vsub.f32 %v689, %v690
        %v692 = vsub.f32 %v682, %v688
        %v693 = vmul.f32 %v692, %v671
        %s694 = scalar_lea.vmem %s518, 8
        %695 = vst.msk [vmem:[%s694] sm:$0xff] %vm673, %v693
        %v696 = vsub.f32 %v685, %v691
        %v697 = vmul.f32 %v696, %v671
        %s698 = scalar_lea.vmem %s526, 8
        %699 = vst.msk [vmem:[%s698] sm:$0xff] %vm673, %v697
        %v700 = vld [vmem:[%s574] sm:$0xff]
        %v701 = vld [vmem:[%s576] sm:$0xff]
        %v702 = vld [vmem:[%s578] sm:$0xff]
        %v703 = vld [vmem:[%s580] sm:$0xff]
        %v704 = vadd.f32 %v702, %v703
        %v705 = vld [vmem:[%s583] sm:$0xff]
        %v706 = vld [vmem:[%s585] sm:$0xff]
        %v707 = vadd.f32 %v705, %v706
        %v708 = vmul.f32 %v700, %v645
        %v709 = vmul.f32 %v701, %v647
        %v710 = vadd.f32 %v708, %v709
        %v711 = vmul.f32 %v700, %v647
        %v712 = vmul.f32 %v701, %v645
        %v713 = vsub.f32 %v711, %v712
        %v714 = vsub.f32 %v704, %v710
        %v715 = vmul.f32 %v714, %v671
        %s716 = scalar_lea.vmem %s518, 16
        %717 = vst.msk [vmem:[%s716] sm:$0xff] %vm673, %v715
        %v718 = vsub.f32 %v707, %v713
        %v719 = vmul.f32 %v718, %v671
        %s720 = scalar_lea.vmem %s526, 16
        %721 = vst.msk [vmem:[%s720] sm:$0xff] %vm673, %v719
        %v722 = vld [vmem:[%s600] sm:$0xff]
        %v723 = vld [vmem:[%s602] sm:$0xff]
        %v724 = vld [vmem:[%s604] sm:$0xff]
        %v725 = vld [vmem:[%s606] sm:$0xff]
        %v726 = vadd.f32 %v724, %v725
        %v727 = vld [vmem:[%s609] sm:$0xff]
        %v728 = vld [vmem:[%s611] sm:$0xff]
        %v729 = vadd.f32 %v727, %v728
        %v730 = vmul.f32 %v722, %v645
        %v731 = vmul.f32 %v723, %v647
        %v732 = vadd.f32 %v730, %v731
        %v733 = vmul.f32 %v722, %v647
        %v734 = vmul.f32 %v723, %v645
        %v735 = vsub.f32 %v733, %v734
        %v736 = vsub.f32 %v726, %v732
        %v737 = vmul.f32 %v736, %v671
        %s738 = scalar_lea.vmem %s518, 24
        %739 = vst.msk [vmem:[%s738] sm:$0xff] %vm673, %v737
        %v740 = vsub.f32 %v729, %v735
        %v741 = vmul.f32 %v740, %v671
        %s742 = scalar_lea.vmem %s526, 24
        %743 = vst.msk [vmem:[%s742] sm:$0xff] %vm673, %v741
        %p744 = scmp.lt.s32.totalorder %s25, 1
        %s745 = scalar_select %p744, %s25, 1
        %p746 = scmp.lt.s32.totalorder %s26, 0
        %s747 = scalar_select %p746, %s26, 0
        %s748 = smul.addr %s745, 4
        %s749 = sadd.s32 %s747, %s748
        %s750 = smul.addr %s749, 8
        %s751 = scalar_lea.vmem %s7, %s750
        %p752 = scmp.lt.s32.totalorder %s25, 1
        %s753 = scalar_select %p752, %s25, 1
        %p754 = scmp.lt.s32.totalorder %s26, 0
        %s755 = scalar_select %p754, %s26, 0
        %s756 = smul.addr %s753, 4
        %s757 = sadd.s32 %s755, %s756
        %s758 = smul.addr %s757, 8
        %s759 = scalar_lea.vmem %s8, %s758
        // Predicated region
        $region53: #{datanet_forward.1} parent=47 // pred_check
          %p760 = pneg %p242
        $region54: #{datanet_forward.1} parent=47 // pred_check_branch
          %762 = sbr.rel (%p760) target = $region56
        $region55: #{datanet_forward.1} parent=47 // pred_region
          _
        $region56: #{datanet_forward.1} parent=47 // pred_fallthru
          _
        // Predicated region
        $region57: #{datanet_forward.1} parent=47 // pred_check
          %p763 = pneg %p270
        $region58: #{datanet_forward.1} parent=47 // pred_check_branch
          %765 = sbr.rel (%p763) target = $region60
        $region59: #{datanet_forward.1} parent=47 // pred_region
          _
        $region60: #{datanet_forward.1} parent=47 // pred_fallthru
          _
      $region48: #{datanet_forward.1} parent=5 // pred_fallthru
        _
      %p766 = scmp.le.s32.totalorder 2, %s16
      // Predicated region
      $region61: #{datanet_forward.1} parent=5 // pred_check
        %p767 = pneg %p766
      $region62: #{datanet_forward.1} parent=5 // pred_check_branch
        %769 = sbr.rel (%p767) target = $region64
      $region63: #{datanet_forward.1} parent=5 // pred_region
        %s770 = ssub.s32 %s16, 2
        // Predicated region
        $region65: #{datanet_forward.1} parent=63 // pred_check
          %p771 = pneg %p248
        $region66: #{datanet_forward.1} parent=63 // pred_check_branch
          %773 = sbr.rel (%p771) target = $region68
        $region67: #{datanet_forward.1} parent=63 // pred_region
          %p774 = scmp.lt.s32.totalorder %s27, 1
          %s775 = scalar_select %p774, %s27, 1
          %p776 = scmp.lt.s32.totalorder %s28, 0
          %s777 = scalar_select %p776, %s28, 0
          %s778 = smul.addr %s775, 4
          %s779 = sadd.s32 %s777, %s778
          %s780 = smul.addr %s779, 8
          %s781 = scalar_lea.vmem %s7, %s780
        $region68: #{datanet_forward.1} parent=63 // pred_fallthru
          _
        // Predicated region
        $region69: #{datanet_forward.1} parent=63 // pred_check
          %p782 = pneg %p276
        $region70: #{datanet_forward.1} parent=63 // pred_check_branch
          %784 = sbr.rel (%p782) target = $region72
        $region71: #{datanet_forward.1} parent=63 // pred_region
          %p785 = scmp.lt.s32.totalorder %s27, 1
          %s786 = scalar_select %p785, %s27, 1
          %p787 = scmp.lt.s32.totalorder %s28, 0
          %s788 = scalar_select %p787, %s28, 0
          %s789 = smul.addr %s786, 4
          %s790 = sadd.s32 %s788, %s789
          %s791 = smul.addr %s790, 8
          %s792 = scalar_lea.vmem %s8, %s791
        $region72: #{datanet_forward.1} parent=63 // pred_fallthru
          _
      $region64: #{datanet_forward.1} parent=5 // pred_fallthru
        _
    $region6: #{datanet_forward.1} parent=1 // loop_footer
      %s20 = sadd.s32 1, %s16
    $region7: #{datanet_forward.1} parent=1 // loop_footer_branch
      %15 = sbr.rel target = $region3
    $region8: #{datanet_forward.1} parent=1 // loop_exit
      _
    %793 = vsyncpa [#allocation3], 1
    %s794 = scalar_lea.sflag [#allocation3], 1
    %795 = vsyncpa %s794, 1

</llo_original>
